<compile_context>
chip_gen: v7x
topology: tpu7x:2x2x1
jax: 0.10.0
libtpu: 0.0.40
codegen_flags: <defaults>
</compile_context>

<pallas_src>
import math
import functools

import jax
import jax.numpy as jnp
from jax import lax
from jax.experimental import pallas as pl
from jax.experimental.pallas import tpu as pltpu


def _layer_norm(x, w, b, eps=1e-5):
    # PyTorch LayerNorm: biased variance, eps inside sqrt.
    mean = jnp.mean(x, axis=-1, keepdims=True)
    var = jnp.mean((x - mean) ** 2, axis=-1, keepdims=True)
    return (x - mean) * lax.rsqrt(var + eps) * w + b


def vit_block_kernel(x_ref, ln1w_ref, ln1b_ref, wqkv_ref, wout_ref, bout_ref,
                     ln2w_ref, ln2b_ref, w1_ref, b1_ref, w2_ref, b2_ref,
                     o_ref,
                     ho_sc,
                     *, heads, dim_head):
    inner = heads * dim_head
    scale = dim_head ** (-0.5)

    x = x_ref[0]                                                 # (N, D) f32

    # ---- LayerNorm 1 + fused QKV projection (bf16 MXU inputs, f32 accumulation) ----
    out1 = _layer_norm(x, ln1w_ref[...], ln1b_ref[...])
    qkv = jnp.dot(out1.astype(jnp.bfloat16), wqkv_ref[...],
                  preferred_element_type=jnp.float32)            # (N, 3*inner) f32

    # 1/sqrt(dh) folded into q (in f32), then q/k/v cast to bf16 once.
    q = (qkv[:, 0:inner] * scale).astype(jnp.bfloat16)
    k = qkv[:, inner:2 * inner].astype(jnp.bfloat16)
    v = qkv[:, 2 * inner:3 * inner].astype(jnp.bfloat16)

    # ---- per-head attention; head outputs staged contiguously in bf16 scratch ----
    dn = (((1,), (1,)), ((), ()))                                # contract last dims (q @ k^T, no transpose)
    for h in range(heads):                                       # static unroll (small head count)
        sl = slice(h * dim_head, (h + 1) * dim_head)
        s = lax.dot_general(q[:, sl], k[:, sl], dn,
                            preferred_element_type=jnp.float32)  # (N, N)
        s = s - jnp.max(s, axis=-1, keepdims=True)
        e = jnp.exp(s)
        p = e * pl.reciprocal(jnp.sum(e, axis=-1, keepdims=True), approx=True)
        ho = jnp.dot(p.astype(jnp.bfloat16), v[:, sl],
                     preferred_element_type=jnp.float32)         # (N, dh)
        ho_sc[:, sl] = ho.astype(jnp.bfloat16)

    # Single full-depth (K = inner) output projection.
    attn_out = jnp.dot(ho_sc[...], wout_ref[...],
                       preferred_element_type=jnp.float32) + bout_ref[...]

    out2 = attn_out + x                                          # residual 1

    # ---- LayerNorm 2 + MLP (W1/W2 fully resident in VMEM as bf16) ----
    ln2 = _layer_norm(out2, ln2w_ref[...], ln2b_ref[...])
    h1 = jnp.dot(ln2.astype(jnp.bfloat16), w1_ref[...],
                 preferred_element_type=jnp.float32) + b1_ref[...]
    g = 0.5 * h1 * (1.0 + lax.erf(h1 * (1.0 / math.sqrt(2.0))))  # exact (erf) GELU, matches nn.GELU()
    h2 = jnp.dot(g.astype(jnp.bfloat16), w2_ref[...],
                 preferred_element_type=jnp.float32) + b2_ref[...]

    o_ref[0] = (h2 + out2).astype(o_ref.dtype)                   # residual 2


def _vmem_limit_bytes():
    # Generation-aware VMEM cap: v5e/v6e have 128 MiB physical VMEM, v7x only 64 MiB.
    limit = 48 * 1024 * 1024                      # safe on every generation
    try:
        info = pltpu.get_tpu_info()
        phys = getattr(info, "vmem_capacity_bytes", None)
        if phys:
            limit = min(int(phys) * 3 // 4, 96 * 1024 * 1024)
    except Exception:
        pass
    return limit


def vit_encoder_block(x, params, *, heads, dim_head=64):
    B, N, D = x.shape
    inner = heads * dim_head
    hidden = 4 * D

    (ln1w, ln1b, wqkv, wout, bout, ln2w, ln2b, w1, b1, w2, b2) = params

    # Matmul weights stored as bf16 at the boundary (f32 accumulation stays in-kernel).
    # Constant index maps => each weight is DMA'd into VMEM once and reused across
    # all batch grid steps (no per-batch re-streaming).
    wqkv = wqkv.astype(jnp.bfloat16)
    wout = wout.astype(jnp.bfloat16)
    w1 = w1.astype(jnp.bfloat16)
    w2 = w2.astype(jnp.bfloat16)

    in_specs = [
        pl.BlockSpec((1, N, D), lambda b: (b, 0, 0)),        # x (one sequence per grid step)
        pl.BlockSpec((1, D), lambda b: (0, 0)),              # ln1 w
        pl.BlockSpec((1, D), lambda b: (0, 0)),              # ln1 b
        pl.BlockSpec((D, 3 * inner), lambda b: (0, 0)),      # Wqkv^T (bf16, resident)
        pl.BlockSpec((inner, D), lambda b: (0, 0)),          # Wout^T (bf16, resident)
        pl.BlockSpec((1, D), lambda b: (0, 0)),              # bout
        pl.BlockSpec((1, D), lambda b: (0, 0)),              # ln2 w
        pl.BlockSpec((1, D), lambda b: (0, 0)),              # ln2 b
        pl.BlockSpec((D, hidden), lambda b: (0, 0)),         # W1^T (bf16, resident)
        pl.BlockSpec((1, hidden), lambda b: (0, 0)),         # b1
        pl.BlockSpec((hidden, D), lambda b: (0, 0)),         # W2^T (bf16, resident)
        pl.BlockSpec((1, D), lambda b: (0, 0)),              # b2
    ]
    out_specs = pl.BlockSpec((1, N, D), lambda b: (b, 0, 0))
    scratch_shapes = [
        pltpu.VMEM((N, inner), jnp.bfloat16),                # staged per-head outputs
    ]

    kernel = functools.partial(vit_block_kernel, heads=heads, dim_head=dim_head)
    return pl.pallas_call(
        kernel,
        out_shape=jax.ShapeDtypeStruct((B, N, D), x.dtype),
        grid=(B,),
        in_specs=in_specs,
        out_specs=out_specs,
        scratch_shapes=scratch_shapes,
        compiler_params=pltpu.CompilerParams(
            dimension_semantics=("parallel",),
            vmem_limit_bytes=_vmem_limit_bytes(),
        ),
    )(x, ln1w, ln1b, wqkv, wout, bout, ln2w, ln2b, w1, b1, w2, b2)


def jax_reference(x, params, *, heads, dim_head=64):
    (ln1w, ln1b, wqkv, wout, bout, ln2w, ln2b, w1, b1, w2, b2) = params
    B, N, D = x.shape
    inner = heads * dim_head
    out1 = _layer_norm(x, ln1w, ln1b)
    qkv = out1 @ wqkv
    q, k, v = jnp.split(qkv, 3, axis=-1)

    def to_heads(t):
        return t.reshape(B, N, heads, dim_head).transpose(0, 2, 1, 3)

    q, k, v = map(to_heads, (q, k, v))
    dots = jnp.einsum('bhnd,bhmd->bhnm', q, k) * dim_head ** (-0.5)
    attn = jax.nn.softmax(dots, axis=-1)
    out = jnp.einsum('bhnm,bhmd->bhnd', attn, v)
    out = out.transpose(0, 2, 1, 3).reshape(B, N, inner)
    attn_out = out @ wout + bout
    out2 = attn_out + x
    ln2 = _layer_norm(out2, ln2w, ln2b)
    h1 = ln2 @ w1 + b1
    g = 0.5 * h1 * (1.0 + lax.erf(h1 / math.sqrt(2.0)))
    h2 = g @ w2 + b2
    return h2 + out2


if __name__ == "__main__":
    # Small shapes consistent with the module: d_model=32, num_heads=2 (dim_head=64 default).
    B, N, D = 2, 8, 32
    heads, dim_head = 2, 64
    inner = heads * dim_head

    key = jax.random.PRNGKey(0)
    keys = jax.random.split(key, 12)
    s = 0.05
    x = jax.random.normal(keys[0], (B, N, D), jnp.float32)

    ln1w = jax.random.normal(keys[1], (1, D), jnp.float32) * s + 1.0
    ln1b = jax.random.normal(keys[2], (1, D), jnp.float32) * s
    wqkv = jax.random.normal(keys[3], (D, 3 * inner), jnp.float32) * s      # to_qkv (no bias)
    wout = jax.random.normal(keys[4], (inner, D), jnp.float32) * s
    bout = jax.random.normal(keys[5], (1, D), jnp.float32) * s
    ln2w = jax.random.normal(keys[6], (1, D), jnp.float32) * s + 1.0
    ln2b = jax.random.normal(keys[7], (1, D), jnp.float32) * s
    w1 = jax.random.normal(keys[8], (D, 4 * D), jnp.float32) * s
    b1 = jax.random.normal(keys[9], (1, 4 * D), jnp.float32) * s
    w2 = jax.random.normal(keys[10], (4 * D, D), jnp.float32) * s
    b2 = jax.random.normal(keys[11], (1, D), jnp.float32) * s

    params = (ln1w, ln1b, wqkv, wout, bout, ln2w, ln2b, w1, b1, w2, b2)

    out = vit_encoder_block(x, params, heads=heads, dim_head=dim_head)
    out = jax.block_until_ready(out)

    ref = jax_reference(x, params, heads=heads, dim_head=dim_head)
    assert out.shape == (B, N, D)
    # bf16 MXU inputs (f32 accumulation) + approx reciprocal in the softmax loosen
    # agreement vs the pure-f32 reference.
    assert jnp.allclose(out, ref, rtol=2e-2, atol=2e-2), "mismatch vs JAX reference"

    print("KERNEL_OK")
</pallas_src>

<mosaic_0001>
module attributes {stable_mosaic.version = 11 : i64} {
  func.func @vit_block_kernel(%arg0: i32, %arg1: memref<1x8x32xf32, #tpu.memory_space<vmem>>, %arg2: memref<1x32xf32, #tpu.memory_space<vmem>>, %arg3: memref<1x32xf32, #tpu.memory_space<vmem>>, %arg4: memref<32x384xbf16, #tpu.memory_space<vmem>>, %arg5: memref<128x32xbf16, #tpu.memory_space<vmem>>, %arg6: memref<1x32xf32, #tpu.memory_space<vmem>>, %arg7: memref<1x32xf32, #tpu.memory_space<vmem>>, %arg8: memref<1x32xf32, #tpu.memory_space<vmem>>, %arg9: memref<32x128xbf16, #tpu.memory_space<vmem>>, %arg10: memref<1x128xf32, #tpu.memory_space<vmem>>, %arg11: memref<128x32xbf16, #tpu.memory_space<vmem>>, %arg12: memref<1x32xf32, #tpu.memory_space<vmem>>, %arg13: memref<1x8x32xf32, #tpu.memory_space<vmem>>, %arg14: memref<8x128xbf16, #tpu.memory_space<vmem>>) attributes {dimension_semantics = [#tpu.dimension_semantics<parallel>], iteration_bounds = array<i64: 2>, scalar_prefetch = 0 : i64, scratch_operands = 1 : i64, tpu.core_type = #tpu.core_type<tc>, window_params = [{transform_indices = @transform_0, window_bounds = array<i64: 1, 8, 32>}, {pipeline_mode = #tpu.pipeline_mode<synchronous>, transform_indices = @transform_1, window_bounds = array<i64: 1, 32>}, {pipeline_mode = #tpu.pipeline_mode<synchronous>, transform_indices = @transform_2, window_bounds = array<i64: 1, 32>}, {pipeline_mode = #tpu.pipeline_mode<synchronous>, transform_indices = @transform_3, window_bounds = array<i64: 32, 384>}, {pipeline_mode = #tpu.pipeline_mode<synchronous>, transform_indices = @transform_4, window_bounds = array<i64: 128, 32>}, {pipeline_mode = #tpu.pipeline_mode<synchronous>, transform_indices = @transform_5, window_bounds = array<i64: 1, 32>}, {pipeline_mode = #tpu.pipeline_mode<synchronous>, transform_indices = @transform_6, window_bounds = array<i64: 1, 32>}, {pipeline_mode = #tpu.pipeline_mode<synchronous>, transform_indices = @transform_7, window_bounds = array<i64: 1, 32>}, {pipeline_mode = #tpu.pipeline_mode<synchronous>, transform_indices = @transform_8, window_bounds = array<i64: 32, 128>}, {pipeline_mode = #tpu.pipeline_mode<synchronous>, transform_indices = @transform_9, window_bounds = array<i64: 1, 128>}, {pipeline_mode = #tpu.pipeline_mode<synchronous>, transform_indices = @transform_10, window_bounds = array<i64: 128, 32>}, {pipeline_mode = #tpu.pipeline_mode<synchronous>, transform_indices = @transform_11, window_bounds = array<i64: 1, 32>}, {transform_indices = @transform_12, window_bounds = array<i64: 1, 8, 32>}]} {
    %c0 = arith.constant 0 : index
    %c0_0 = arith.constant 0 : index
    %c0_1 = arith.constant 0 : index
    %0 = vector.load %arg1[%c0, %c0_0, %c0_1] : memref<1x8x32xf32, #tpu.memory_space<vmem>>, vector<1x8x32xf32>
    %1 = vector.shape_cast %0 : vector<1x8x32xf32> to vector<8x32xf32>
    %c0_2 = arith.constant 0 : index
    %c0_3 = arith.constant 0 : index
    %2 = vector.load %arg2[%c0_2, %c0_3] : memref<1x32xf32, #tpu.memory_space<vmem>>, vector<1x32xf32>
    %c0_4 = arith.constant 0 : index
    %c0_5 = arith.constant 0 : index
    %3 = vector.load %arg3[%c0_4, %c0_5] : memref<1x32xf32, #tpu.memory_space<vmem>>, vector<1x32xf32>
    %cst = arith.constant dense<0.000000e+00> : vector<8xf32>
    %4 = vector.multi_reduction <add>, %1, %cst [1] : vector<8x32xf32> to vector<8xf32>
    %5 = vector.shape_cast %4 : vector<8xf32> to vector<8x1xf32>
    %cst_6 = arith.constant 3.200000e+01 : f32
    %6 = vector.broadcast %cst_6 : f32 to vector<8x1xf32>
    %7 = arith.divf %5, %6 : vector<8x1xf32>
    %8 = vector.broadcast %7 : vector<8x1xf32> to vector<8x32xf32>
    %9 = arith.subf %1, %8 : vector<8x32xf32>
    %10 = arith.mulf %9, %9 : vector<8x32xf32>
    %cst_7 = arith.constant dense<0.000000e+00> : vector<8xf32>
    %11 = vector.multi_reduction <add>, %10, %cst_7 [1] : vector<8x32xf32> to vector<8xf32>
    %12 = vector.shape_cast %11 : vector<8xf32> to vector<8x1xf32>
    %cst_8 = arith.constant 3.200000e+01 : f32
    %13 = vector.broadcast %cst_8 : f32 to vector<8x1xf32>
    %14 = arith.divf %12, %13 : vector<8x1xf32>
    %15 = vector.broadcast %7 : vector<8x1xf32> to vector<8x32xf32>
    %16 = arith.subf %1, %15 : vector<8x32xf32>
    %cst_9 = arith.constant 9.99999974E-6 : f32
    %17 = vector.broadcast %cst_9 : f32 to vector<8x1xf32>
    %18 = arith.addf %14, %17 : vector<8x1xf32>
    %19 = math.rsqrt %18 : vector<8x1xf32>
    %20 = vector.broadcast %19 : vector<8x1xf32> to vector<8x32xf32>
    %21 = arith.mulf %16, %20 : vector<8x32xf32>
    %22 = vector.broadcast %2 : vector<1x32xf32> to vector<8x32xf32>
    %23 = arith.mulf %21, %22 : vector<8x32xf32>
    %24 = vector.broadcast %3 : vector<1x32xf32> to vector<8x32xf32>
    %25 = arith.addf %23, %24 : vector<8x32xf32>
    %26 = arith.truncf %25 : vector<8x32xf32> to vector<8x32xbf16>
    %c0_10 = arith.constant 0 : index
    %c0_11 = arith.constant 0 : index
    %27 = vector.load %arg4[%c0_10, %c0_11] : memref<32x384xbf16, #tpu.memory_space<vmem>>, vector<32x384xbf16>
    %cst_12 = arith.constant dense<0.000000e+00> : vector<8x384xf32>
    %28 = tpu.matmul %26, %27, %cst_12 {dimension_numbers = #tpu.dot_dimension_numbers<[1], [0], [0], [1], [0, 0, 1, 1], [], []>} : vector<8x32xbf16>, vector<32x384xbf16>, vector<8x384xf32> -> vector<8x384xf32>
    %29 = vector.extract_strided_slice %28 {offsets = [0, 0], sizes = [8, 128], strides = [1, 1]} : vector<8x384xf32> to vector<8x128xf32>
    %cst_13 = arith.constant 1.250000e-01 : f32
    %30 = vector.broadcast %cst_13 : f32 to vector<8x128xf32>
    %31 = arith.mulf %29, %30 : vector<8x128xf32>
    %32 = arith.truncf %31 : vector<8x128xf32> to vector<8x128xbf16>
    %33 = vector.extract_strided_slice %28 {offsets = [0, 128], sizes = [8, 128], strides = [1, 1]} : vector<8x384xf32> to vector<8x128xf32>
    %34 = arith.truncf %33 : vector<8x128xf32> to vector<8x128xbf16>
    %35 = vector.extract_strided_slice %28 {offsets = [0, 256], sizes = [8, 128], strides = [1, 1]} : vector<8x384xf32> to vector<8x128xf32>
    %36 = arith.truncf %35 : vector<8x128xf32> to vector<8x128xbf16>
    %37 = vector.extract_strided_slice %32 {offsets = [0, 0], sizes = [8, 64], strides = [1, 1]} : vector<8x128xbf16> to vector<8x64xbf16>
    %38 = vector.extract_strided_slice %34 {offsets = [0, 0], sizes = [8, 64], strides = [1, 1]} : vector<8x128xbf16> to vector<8x64xbf16>
    %cst_14 = arith.constant dense<0.000000e+00> : vector<8x8xf32>
    %39 = tpu.matmul %37, %38, %cst_14 {dimension_numbers = #tpu.dot_dimension_numbers<[1], [1], [0], [0], [0, 0, 1, 0], [], []>} : vector<8x64xbf16>, vector<8x64xbf16>, vector<8x8xf32> -> vector<8x8xf32>
    %cst_15 = arith.constant dense<0xFF800000> : vector<8xf32>
    %40 = vector.multi_reduction <maximumf>, %39, %cst_15 [1] : vector<8x8xf32> to vector<8xf32>
    %41 = vector.shape_cast %40 : vector<8xf32> to vector<8x1xf32>
    %42 = vector.broadcast %41 : vector<8x1xf32> to vector<8x8xf32>
    %43 = arith.subf %39, %42 : vector<8x8xf32>
    %44 = math.exp %43 : vector<8x8xf32>
    %cst_16 = arith.constant dense<0.000000e+00> : vector<8xf32>
    %45 = vector.multi_reduction <add>, %44, %cst_16 [1] : vector<8x8xf32> to vector<8xf32>
    %46 = vector.shape_cast %45 : vector<8xf32> to vector<8x1xf32>
    %47 = tpu.reciprocal %46 {approx = true} : vector<8x1xf32> -> vector<8x1xf32>
    %48 = vector.broadcast %47 : vector<8x1xf32> to vector<8x8xf32>
    %49 = arith.mulf %44, %48 : vector<8x8xf32>
    %50 = arith.truncf %49 : vector<8x8xf32> to vector<8x8xbf16>
    %51 = vector.extract_strided_slice %36 {offsets = [0, 0], sizes = [8, 64], strides = [1, 1]} : vector<8x128xbf16> to vector<8x64xbf16>
    %cst_17 = arith.constant dense<0.000000e+00> : vector<8x64xf32>
    %52 = tpu.matmul %50, %51, %cst_17 {dimension_numbers = #tpu.dot_dimension_numbers<[1], [0], [0], [1], [0, 0, 1, 1], [], []>} : vector<8x8xbf16>, vector<8x64xbf16>, vector<8x64xf32> -> vector<8x64xf32>
    %53 = arith.truncf %52 : vector<8x64xf32> to vector<8x64xbf16>
    %c0_18 = arith.constant 0 : index
    %c0_19 = arith.constant 0 : index
    %54 = vector.load %arg14[%c0_18, %c0_19] : memref<8x128xbf16, #tpu.memory_space<vmem>>, vector<8x64xbf16>
    tpu.vector_store %arg14[%c0_18, %c0_19], %53 {strides = array<i32>} : memref<8x128xbf16, #tpu.memory_space<vmem>>, vector<8x64xbf16>,
    %55 = vector.extract_strided_slice %32 {offsets = [0, 64], sizes = [8, 64], strides = [1, 1]} : vector<8x128xbf16> to vector<8x64xbf16>
    %56 = vector.extract_strided_slice %34 {offsets = [0, 64], sizes = [8, 64], strides = [1, 1]} : vector<8x128xbf16> to vector<8x64xbf16>
    %cst_20 = arith.constant dense<0.000000e+00> : vector<8x8xf32>
    %57 = tpu.matmul %55, %56, %cst_20 {dimension_numbers = #tpu.dot_dimension_numbers<[1], [1], [0], [0], [0, 0, 1, 0], [], []>} : vector<8x64xbf16>, vector<8x64xbf16>, vector<8x8xf32> -> vector<8x8xf32>
    %cst_21 = arith.constant dense<0xFF800000> : vector<8xf32>
    %58 = vector.multi_reduction <maximumf>, %57, %cst_21 [1] : vector<8x8xf32> to vector<8xf32>
    %59 = vector.shape_cast %58 : vector<8xf32> to vector<8x1xf32>
    %60 = vector.broadcast %59 : vector<8x1xf32> to vector<8x8xf32>
    %61 = arith.subf %57, %60 : vector<8x8xf32>
    %62 = math.exp %61 : vector<8x8xf32>
    %cst_22 = arith.constant dense<0.000000e+00> : vector<8xf32>
    %63 = vector.multi_reduction <add>, %62, %cst_22 [1] : vector<8x8xf32> to vector<8xf32>
    %64 = vector.shape_cast %63 : vector<8xf32> to vector<8x1xf32>
    %65 = tpu.reciprocal %64 {approx = true} : vector<8x1xf32> -> vector<8x1xf32>
    %66 = vector.broadcast %65 : vector<8x1xf32> to vector<8x8xf32>
    %67 = arith.mulf %62, %66 : vector<8x8xf32>
    %68 = arith.truncf %67 : vector<8x8xf32> to vector<8x8xbf16>
    %69 = vector.extract_strided_slice %36 {offsets = [0, 64], sizes = [8, 64], strides = [1, 1]} : vector<8x128xbf16> to vector<8x64xbf16>
    %cst_23 = arith.constant dense<0.000000e+00> : vector<8x64xf32>
    %70 = tpu.matmul %68, %69, %cst_23 {dimension_numbers = #tpu.dot_dimension_numbers<[1], [0], [0], [1], [0, 0, 1, 1], [], []>} : vector<8x8xbf16>, vector<8x64xbf16>, vector<8x64xf32> -> vector<8x64xf32>
    %71 = arith.truncf %70 : vector<8x64xf32> to vector<8x64xbf16>
    %c0_24 = arith.constant 0 : index
    %c64 = arith.constant 64 : index
    %72 = vector.load %arg14[%c0_24, %c64] : memref<8x128xbf16, #tpu.memory_space<vmem>>, vector<8x64xbf16>
    tpu.vector_store %arg14[%c0_24, %c64], %71 {strides = array<i32>} : memref<8x128xbf16, #tpu.memory_space<vmem>>, vector<8x64xbf16>,
    %c0_25 = arith.constant 0 : index
    %c0_26 = arith.constant 0 : index
    %73 = vector.load %arg14[%c0_25, %c0_26] : memref<8x128xbf16, #tpu.memory_space<vmem>>, vector<8x128xbf16>
    %c0_27 = arith.constant 0 : index
    %c0_28 = arith.constant 0 : index
    %74 = vector.load %arg5[%c0_27, %c0_28] : memref<128x32xbf16, #tpu.memory_space<vmem>>, vector<128x32xbf16>
    %cst_29 = arith.constant dense<0.000000e+00> : vector<8x32xf32>
    %75 = tpu.matmul %73, %74, %cst_29 {dimension_numbers = #tpu.dot_dimension_numbers<[1], [0], [0], [1], [0, 0, 1, 1], [], []>} : vector<8x128xbf16>, vector<128x32xbf16>, vector<8x32xf32> -> vector<8x32xf32>
    %c0_30 = arith.constant 0 : index
    %c0_31 = arith.constant 0 : index
    %76 = vector.load %arg6[%c0_30, %c0_31] : memref<1x32xf32, #tpu.memory_space<vmem>>, vector<1x32xf32>
    %77 = vector.broadcast %76 : vector<1x32xf32> to vector<8x32xf32>
    %78 = arith.addf %75, %77 : vector<8x32xf32>
    %79 = arith.addf %78, %1 : vector<8x32xf32>
    %c0_32 = arith.constant 0 : index
    %c0_33 = arith.constant 0 : index
    %80 = vector.load %arg7[%c0_32, %c0_33] : memref<1x32xf32, #tpu.memory_space<vmem>>, vector<1x32xf32>
    %c0_34 = arith.constant 0 : index
    %c0_35 = arith.constant 0 : index
    %81 = vector.load %arg8[%c0_34, %c0_35] : memref<1x32xf32, #tpu.memory_space<vmem>>, vector<1x32xf32>
    %cst_36 = arith.constant dense<0.000000e+00> : vector<8xf32>
    %82 = vector.multi_reduction <add>, %79, %cst_36 [1] : vector<8x32xf32> to vector<8xf32>
    %83 = vector.shape_cast %82 : vector<8xf32> to vector<8x1xf32>
    %cst_37 = arith.constant 3.200000e+01 : f32
    %84 = vector.broadcast %cst_37 : f32 to vector<8x1xf32>
    %85 = arith.divf %83, %84 : vector<8x1xf32>
    %86 = vector.broadcast %85 : vector<8x1xf32> to vector<8x32xf32>
    %87 = arith.subf %79, %86 : vector<8x32xf32>
    %88 = arith.mulf %87, %87 : vector<8x32xf32>
    %cst_38 = arith.constant dense<0.000000e+00> : vector<8xf32>
    %89 = vector.multi_reduction <add>, %88, %cst_38 [1] : vector<8x32xf32> to vector<8xf32>
    %90 = vector.shape_cast %89 : vector<8xf32> to vector<8x1xf32>
    %cst_39 = arith.constant 3.200000e+01 : f32
    %91 = vector.broadcast %cst_39 : f32 to vector<8x1xf32>
    %92 = arith.divf %90, %91 : vector<8x1xf32>
    %93 = vector.broadcast %85 : vector<8x1xf32> to vector<8x32xf32>
    %94 = arith.subf %79, %93 : vector<8x32xf32>
    %cst_40 = arith.constant 9.99999974E-6 : f32
    %95 = vector.broadcast %cst_40 : f32 to vector<8x1xf32>
    %96 = arith.addf %92, %95 : vector<8x1xf32>
    %97 = math.rsqrt %96 : vector<8x1xf32>
    %98 = vector.broadcast %97 : vector<8x1xf32> to vector<8x32xf32>
    %99 = arith.mulf %94, %98 : vector<8x32xf32>
    %100 = vector.broadcast %80 : vector<1x32xf32> to vector<8x32xf32>
    %101 = arith.mulf %99, %100 : vector<8x32xf32>
    %102 = vector.broadcast %81 : vector<1x32xf32> to vector<8x32xf32>
    %103 = arith.addf %101, %102 : vector<8x32xf32>
    %104 = arith.truncf %103 : vector<8x32xf32> to vector<8x32xbf16>
    %c0_41 = arith.constant 0 : index
    %c0_42 = arith.constant 0 : index
    %105 = vector.load %arg9[%c0_41, %c0_42] : memref<32x128xbf16, #tpu.memory_space<vmem>>, vector<32x128xbf16>
    %cst_43 = arith.constant dense<0.000000e+00> : vector<8x128xf32>
    %106 = tpu.matmul %104, %105, %cst_43 {dimension_numbers = #tpu.dot_dimension_numbers<[1], [0], [0], [1], [0, 0, 1, 1], [], []>} : vector<8x32xbf16>, vector<32x128xbf16>, vector<8x128xf32> -> vector<8x128xf32>
    %c0_44 = arith.constant 0 : index
    %c0_45 = arith.constant 0 : index
    %107 = vector.load %arg10[%c0_44, %c0_45] : memref<1x128xf32, #tpu.memory_space<vmem>>, vector<1x128xf32>
    %108 = vector.broadcast %107 : vector<1x128xf32> to vector<8x128xf32>
    %109 = arith.addf %106, %108 : vector<8x128xf32>
    %cst_46 = arith.constant 5.000000e-01 : f32
    %110 = vector.broadcast %cst_46 : f32 to vector<8x128xf32>
    %111 = arith.mulf %110, %109 : vector<8x128xf32>
    %cst_47 = arith.constant 0.707106769 : f32
    %112 = vector.broadcast %cst_47 : f32 to vector<8x128xf32>
    %113 = arith.mulf %109, %112 : vector<8x128xf32>
    %114 = math.erf %113 : vector<8x128xf32>
    %cst_48 = arith.constant 1.000000e+00 : f32
    %115 = vector.broadcast %cst_48 : f32 to vector<8x128xf32>
    %116 = arith.addf %115, %114 : vector<8x128xf32>
    %117 = arith.mulf %111, %116 : vector<8x128xf32>
    %118 = arith.truncf %117 : vector<8x128xf32> to vector<8x128xbf16>
    %c0_49 = arith.constant 0 : index
    %c0_50 = arith.constant 0 : index
    %119 = vector.load %arg11[%c0_49, %c0_50] : memref<128x32xbf16, #tpu.memory_space<vmem>>, vector<128x32xbf16>
    %cst_51 = arith.constant dense<0.000000e+00> : vector<8x32xf32>
    %120 = tpu.matmul %118, %119, %cst_51 {dimension_numbers = #tpu.dot_dimension_numbers<[1], [0], [0], [1], [0, 0, 1, 1], [], []>} : vector<8x128xbf16>, vector<128x32xbf16>, vector<8x32xf32> -> vector<8x32xf32>
    %c0_52 = arith.constant 0 : index
    %c0_53 = arith.constant 0 : index
    %121 = vector.load %arg12[%c0_52, %c0_53] : memref<1x32xf32, #tpu.memory_space<vmem>>, vector<1x32xf32>
    %122 = vector.broadcast %121 : vector<1x32xf32> to vector<8x32xf32>
    %123 = arith.addf %120, %122 : vector<8x32xf32>
    %124 = arith.addf %123, %79 : vector<8x32xf32>
    %c0_54 = arith.constant 0 : index
    %c0_55 = arith.constant 0 : index
    %c0_56 = arith.constant 0 : index
    %125 = vector.load %arg13[%c0_54, %c0_55, %c0_56] : memref<1x8x32xf32, #tpu.memory_space<vmem>>, vector<1x8x32xf32>
    %126 = vector.shape_cast %125 : vector<1x8x32xf32> to vector<8x32xf32>
    %127 = vector.shape_cast %124 : vector<8x32xf32> to vector<1x8x32xf32>
    tpu.vector_store %arg13[%c0_54, %c0_55, %c0_56], %127 {strides = array<i32>} : memref<1x8x32xf32, #tpu.memory_space<vmem>>, vector<1x8x32xf32>,
    return
  }
  func.func @transform_0(%arg0: i32) -> (i32, i32, i32) {
    %c0_i32 = arith.constant 0 : i32
    %c0_i32_0 = arith.constant 0 : i32
    %c0_i32_1 = arith.constant 0 : i32
    return %arg0, %c0_i32, %c0_i32_0 : i32, i32, i32
  }
  func.func @transform_1(%arg0: i32) -> (i32, i32) {
    %c0_i32 = arith.constant 0 : i32
    %c0_i32_0 = arith.constant 0 : i32
    %c0_i32_1 = arith.constant 0 : i32
    return %c0_i32, %c0_i32_0 : i32, i32
  }
  func.func @transform_2(%arg0: i32) -> (i32, i32) {
    %c0_i32 = arith.constant 0 : i32
    %c0_i32_0 = arith.constant 0 : i32
    %c0_i32_1 = arith.constant 0 : i32
    return %c0_i32, %c0_i32_0 : i32, i32
  }
  func.func @transform_3(%arg0: i32) -> (i32, i32) {
    %c0_i32 = arith.constant 0 : i32
    %c0_i32_0 = arith.constant 0 : i32
    %c0_i32_1 = arith.constant 0 : i32
    return %c0_i32, %c0_i32_0 : i32, i32
  }
  func.func @transform_4(%arg0: i32) -> (i32, i32) {
    %c0_i32 = arith.constant 0 : i32
    %c0_i32_0 = arith.constant 0 : i32
    %c0_i32_1 = arith.constant 0 : i32
    return %c0_i32, %c0_i32_0 : i32, i32
  }
  func.func @transform_5(%arg0: i32) -> (i32, i32) {
    %c0_i32 = arith.constant 0 : i32
    %c0_i32_0 = arith.constant 0 : i32
    %c0_i32_1 = arith.constant 0 : i32
    return %c0_i32, %c0_i32_0 : i32, i32
  }
  func.func @transform_6(%arg0: i32) -> (i32, i32) {
    %c0_i32 = arith.constant 0 : i32
    %c0_i32_0 = arith.constant 0 : i32
    %c0_i32_1 = arith.constant 0 : i32
    return %c0_i32, %c0_i32_0 : i32, i32
  }
  func.func @transform_7(%arg0: i32) -> (i32, i32) {
    %c0_i32 = arith.constant 0 : i32
    %c0_i32_0 = arith.constant 0 : i32
    %c0_i32_1 = arith.constant 0 : i32
    return %c0_i32, %c0_i32_0 : i32, i32
  }
  func.func @transform_8(%arg0: i32) -> (i32, i32) {
    %c0_i32 = arith.constant 0 : i32
    %c0_i32_0 = arith.constant 0 : i32
    %c0_i32_1 = arith.constant 0 : i32
    return %c0_i32, %c0_i32_0 : i32, i32
  }
  func.func @transform_9(%arg0: i32) -> (i32, i32) {
    %c0_i32 = arith.constant 0 : i32
    %c0_i32_0 = arith.constant 0 : i32
    %c0_i32_1 = arith.constant 0 : i32
    return %c0_i32, %c0_i32_0 : i32, i32
  }
  func.func @transform_10(%arg0: i32) -> (i32, i32) {
    %c0_i32 = arith.constant 0 : i32
    %c0_i32_0 = arith.constant 0 : i32
    %c0_i32_1 = arith.constant 0 : i32
    return %c0_i32, %c0_i32_0 : i32, i32
  }
  func.func @transform_11(%arg0: i32) -> (i32, i32) {
    %c0_i32 = arith.constant 0 : i32
    %c0_i32_0 = arith.constant 0 : i32
    %c0_i32_1 = arith.constant 0 : i32
    return %c0_i32, %c0_i32_0 : i32, i32
  }
  func.func @transform_12(%arg0: i32) -> (i32, i32, i32) {
    %c0_i32 = arith.constant 0 : i32
    %c0_i32_0 = arith.constant 0 : i32
    %c0_i32_1 = arith.constant 0 : i32
    return %arg0, %c0_i32, %c0_i32_0 : i32, i32, i32
  }
}

</mosaic_0001>

<llo_original>
// kernel: tpu_custom_call.1
$region0: #{tpu_custom_call.1}
  #allocation0 [shape = 'u32[]', space=smem, size = 0x4, offset = 0x4, fixed_abs, tag = 'smem constant byte address 0x4 - core index']
  #allocation1 [shape = 'u32[144,128]{1,0:T(1,128)}', space=vmem, size = 0x12000, scoped, tag = 'internal scratch']
  #allocation2 [shape = 'bf16[8,128]{1,0:T(8,128)(2,1)}', space=vmem, size = 0x800, scoped, tag = 'scratch operand']
  %s0 = inlined_call_operand.vmem [shape: f32[2,8,32], index: 0, kind: input, shape index: {}]
  %s1 = inlined_call_operand.vmem [shape: f32[1,32], index: 1, kind: input, shape index: {}]
  %s2 = inlined_call_operand.vmem [shape: f32[1,32], index: 2, kind: input, shape index: {}]
  %s3 = inlined_call_operand.vmem [shape: bf16[32,384], index: 3, kind: input, shape index: {}]
  %s4 = inlined_call_operand.vmem [shape: bf16[128,32], index: 4, kind: input, shape index: {}]
  %s5 = inlined_call_operand.vmem [shape: f32[1,32], index: 5, kind: input, shape index: {}]
  %s6 = inlined_call_operand.vmem [shape: f32[1,32], index: 6, kind: input, shape index: {}]
  %s7 = inlined_call_operand.vmem [shape: f32[1,32], index: 7, kind: input, shape index: {}]
  %s8 = inlined_call_operand.vmem [shape: bf16[32,128], index: 8, kind: input, shape index: {}]
  %s9 = inlined_call_operand.vmem [shape: f32[1,128], index: 9, kind: input, shape index: {}]
  %s10 = inlined_call_operand.vmem [shape: bf16[128,32], index: 10, kind: input, shape index: {}]
  %s11 = inlined_call_operand.vmem [shape: f32[1,32], index: 11, kind: input, shape index: {}]
  %s12 = inlined_call_operand.hbm [shape: f32[2,8,32], index: 12, kind: output, shape index: {}]
  %s13 = sld [smem:[#allocation0]]
  $region81: #{tpu_custom_call.1} parent=0
    _
  %s15 = ssub.s32 1, %s13
  %s16 = scalar_select 0, %s15, %s13
  $region1: #{tpu_custom_call.1} parent=0
    #allocation3 [shape = 'u8[8192]{0}', space=vmem, size = 0x2000, scoped, tag = 'output window, operand 0']
    #allocation4 [shape = 's32[2]{0}', space=sflag, size = 0x8, scoped, tag = 'scoped memory for tpu_custom_call.1']
    %17 = vsyncpa [#allocation4], 0
    %s18 = scalar_lea.sflag [#allocation4], 1
    %19 = vsyncpa %s18, 0
    loop: start=0, step=1, limit=4
    $region2: #{tpu_custom_call.1} parent=1 // loop_pre_header
      _
    $region3: #{tpu_custom_call.1} parent=1 // loop_header
      %s21 = sphi 0, %s25
      %p22 = scmp.ge.s32.totalorder %s21, 4
      %s31 = sphi 0, %s33
      %s34 = sphi 0, %s31
      %s35 = sphi 0, %s34
      %s51 = sphi 0, %s35
      %s55 = sphi 0, %s55
      %s57 = sphi 0, %s55
      %s58 = sphi 0, %s57
      %s72 = sphi 0, %s58
      %s76 = sphi 0, %s76
      %s78 = sphi 0, %s76
      %s79 = sphi 0, %s78
      %s93 = sphi 0, %s79
      %s97 = sphi 0, %s97
      %s99 = sphi 0, %s97
      %s100 = sphi 0, %s99
      %s114 = sphi 0, %s100
      %s118 = sphi 0, %s118
      %s120 = sphi 0, %s118
      %s121 = sphi 0, %s120
      %s135 = sphi 0, %s121
      %s139 = sphi 0, %s139
      %s141 = sphi 0, %s139
      %s142 = sphi 0, %s141
      %s156 = sphi 0, %s142
      %s160 = sphi 0, %s160
      %s162 = sphi 0, %s160
      %s163 = sphi 0, %s162
      %s177 = sphi 0, %s163
      %s181 = sphi 0, %s181
      %s183 = sphi 0, %s181
      %s184 = sphi 0, %s183
      %s198 = sphi 0, %s184
      %s202 = sphi 0, %s202
      %s204 = sphi 0, %s202
      %s205 = sphi 0, %s204
      %s219 = sphi 0, %s205
      %s223 = sphi 0, %s223
      %s225 = sphi 0, %s223
      %s226 = sphi 0, %s225
      %s240 = sphi 0, %s226
      %s244 = sphi 0, %s244
      %s246 = sphi 0, %s244
      %s247 = sphi 0, %s246
      %s261 = sphi 0, %s247
      %s265 = sphi 0, %s265
      %s267 = sphi 0, %s265
      %s268 = sphi 0, %s267
      %s282 = sphi 0, %s268
      %s288 = sphi 0, %s290
      %s291 = sphi 0, %s288
      %s292 = sphi 0, %s291
      %s308 = sphi 0, %s292
    $region4: #{tpu_custom_call.1} parent=1 // loop_header_branch
      %24 = sbr.rel (%p22) target = $region8
    $region5: #{tpu_custom_call.1} parent=1 // loop_body
      %s26 = ssub.s32 %s21, 1
      %s27 = ssub.s32 %s21, 2
      %s28 = sadd.s32 %s21, 1
      %s29 = ssub.s32 %s21, %s28
      %p30 = scmp.eq.s32.totalorder %s29, 0
      %s32 = sadd.s32 %s31, 1
      %s33 = scalar_select %p30, %s31, %s32
      %p36 = pneg %p30
      %p37 = scmp.eq.s32.totalorder %s21, 1
      %p38 = por %p36, %p37
      %p39 = scmp.ne.s32.totalorder %s31, %s34
      %p40 = scmp.eq.s32.totalorder %s21, 0
      %p41 = por %p39, %p40
      %p42 = scmp.ne.s32.totalorder %s31, %s34
      %p43 = scmp.eq.s32.totalorder %s26, 1
      %p44 = por %p42, %p43
      %p45 = scmp.ne.s32.totalorder %s34, %s35
      %p46 = scmp.eq.s32.totalorder %s26, 0
      %p47 = por %p45, %p46
      %p48 = scmp.ne.s32.totalorder %s34, %s35
      %p49 = scmp.eq.s32.totalorder %s27, 1
      %p50 = por %p48, %p49
      %p52 = scmp.ne.s32.totalorder %s35, %s51
      %p53 = scmp.eq.s32.totalorder %s27, 0
      %p54 = por %p52, %p53
      %s56 = sadd.s32 %s55, 1
      %p59 = scmp.eq.s32.totalorder %s21, 1
      %p60 = scmp.ne.s32.totalorder %s55, %s57
      %p61 = scmp.eq.s32.totalorder %s21, 0
      %p62 = por %p60, %p61
      %p63 = scmp.ne.s32.totalorder %s55, %s57
      %p64 = scmp.eq.s32.totalorder %s26, 1
      %p65 = por %p63, %p64
      %p66 = scmp.ne.s32.totalorder %s57, %s58
      %p67 = scmp.eq.s32.totalorder %s26, 0
      %p68 = por %p66, %p67
      %p69 = scmp.ne.s32.totalorder %s57, %s58
      %p70 = scmp.eq.s32.totalorder %s27, 1
      %p71 = por %p69, %p70
      %p73 = scmp.ne.s32.totalorder %s58, %s72
      %p74 = scmp.eq.s32.totalorder %s27, 0
      %p75 = por %p73, %p74
      %s77 = sadd.s32 %s76, 1
      %p80 = scmp.eq.s32.totalorder %s21, 1
      %p81 = scmp.ne.s32.totalorder %s76, %s78
      %p82 = scmp.eq.s32.totalorder %s21, 0
      %p83 = por %p81, %p82
      %p84 = scmp.ne.s32.totalorder %s76, %s78
      %p85 = scmp.eq.s32.totalorder %s26, 1
      %p86 = por %p84, %p85
      %p87 = scmp.ne.s32.totalorder %s78, %s79
      %p88 = scmp.eq.s32.totalorder %s26, 0
      %p89 = por %p87, %p88
      %p90 = scmp.ne.s32.totalorder %s78, %s79
      %p91 = scmp.eq.s32.totalorder %s27, 1
      %p92 = por %p90, %p91
      %p94 = scmp.ne.s32.totalorder %s79, %s93
      %p95 = scmp.eq.s32.totalorder %s27, 0
      %p96 = por %p94, %p95
      %s98 = sadd.s32 %s97, 1
      %p101 = scmp.eq.s32.totalorder %s21, 1
      %p102 = scmp.ne.s32.totalorder %s97, %s99
      %p103 = scmp.eq.s32.totalorder %s21, 0
      %p104 = por %p102, %p103
      %p105 = scmp.ne.s32.totalorder %s97, %s99
      %p106 = scmp.eq.s32.totalorder %s26, 1
      %p107 = por %p105, %p106
      %p108 = scmp.ne.s32.totalorder %s99, %s100
      %p109 = scmp.eq.s32.totalorder %s26, 0
      %p110 = por %p108, %p109
      %p111 = scmp.ne.s32.totalorder %s99, %s100
      %p112 = scmp.eq.s32.totalorder %s27, 1
      %p113 = por %p111, %p112
      %p115 = scmp.ne.s32.totalorder %s100, %s114
      %p116 = scmp.eq.s32.totalorder %s27, 0
      %p117 = por %p115, %p116
      %s119 = sadd.s32 %s118, 1
      %p122 = scmp.eq.s32.totalorder %s21, 1
      %p123 = scmp.ne.s32.totalorder %s118, %s120
      %p124 = scmp.eq.s32.totalorder %s21, 0
      %p125 = por %p123, %p124
      %p126 = scmp.ne.s32.totalorder %s118, %s120
      %p127 = scmp.eq.s32.totalorder %s26, 1
      %p128 = por %p126, %p127
      %p129 = scmp.ne.s32.totalorder %s120, %s121
      %p130 = scmp.eq.s32.totalorder %s26, 0
      %p131 = por %p129, %p130
      %p132 = scmp.ne.s32.totalorder %s120, %s121
      %p133 = scmp.eq.s32.totalorder %s27, 1
      %p134 = por %p132, %p133
      %p136 = scmp.ne.s32.totalorder %s121, %s135
      %p137 = scmp.eq.s32.totalorder %s27, 0
      %p138 = por %p136, %p137
      %s140 = sadd.s32 %s139, 1
      %p143 = scmp.eq.s32.totalorder %s21, 1
      %p144 = scmp.ne.s32.totalorder %s139, %s141
      %p145 = scmp.eq.s32.totalorder %s21, 0
      %p146 = por %p144, %p145
      %p147 = scmp.ne.s32.totalorder %s139, %s141
      %p148 = scmp.eq.s32.totalorder %s26, 1
      %p149 = por %p147, %p148
      %p150 = scmp.ne.s32.totalorder %s141, %s142
      %p151 = scmp.eq.s32.totalorder %s26, 0
      %p152 = por %p150, %p151
      %p153 = scmp.ne.s32.totalorder %s141, %s142
      %p154 = scmp.eq.s32.totalorder %s27, 1
      %p155 = por %p153, %p154
      %p157 = scmp.ne.s32.totalorder %s142, %s156
      %p158 = scmp.eq.s32.totalorder %s27, 0
      %p159 = por %p157, %p158
      %s161 = sadd.s32 %s160, 1
      %p164 = scmp.eq.s32.totalorder %s21, 1
      %p165 = scmp.ne.s32.totalorder %s160, %s162
      %p166 = scmp.eq.s32.totalorder %s21, 0
      %p167 = por %p165, %p166
      %p168 = scmp.ne.s32.totalorder %s160, %s162
      %p169 = scmp.eq.s32.totalorder %s26, 1
      %p170 = por %p168, %p169
      %p171 = scmp.ne.s32.totalorder %s162, %s163
      %p172 = scmp.eq.s32.totalorder %s26, 0
      %p173 = por %p171, %p172
      %p174 = scmp.ne.s32.totalorder %s162, %s163
      %p175 = scmp.eq.s32.totalorder %s27, 1
      %p176 = por %p174, %p175
      %p178 = scmp.ne.s32.totalorder %s163, %s177
      %p179 = scmp.eq.s32.totalorder %s27, 0
      %p180 = por %p178, %p179
      %s182 = sadd.s32 %s181, 1
      %p185 = scmp.eq.s32.totalorder %s21, 1
      %p186 = scmp.ne.s32.totalorder %s181, %s183
      %p187 = scmp.eq.s32.totalorder %s21, 0
      %p188 = por %p186, %p187
      %p189 = scmp.ne.s32.totalorder %s181, %s183
      %p190 = scmp.eq.s32.totalorder %s26, 1
      %p191 = por %p189, %p190
      %p192 = scmp.ne.s32.totalorder %s183, %s184
      %p193 = scmp.eq.s32.totalorder %s26, 0
      %p194 = por %p192, %p193
      %p195 = scmp.ne.s32.totalorder %s183, %s184
      %p196 = scmp.eq.s32.totalorder %s27, 1
      %p197 = por %p195, %p196
      %p199 = scmp.ne.s32.totalorder %s184, %s198
      %p200 = scmp.eq.s32.totalorder %s27, 0
      %p201 = por %p199, %p200
      %s203 = sadd.s32 %s202, 1
      %p206 = scmp.eq.s32.totalorder %s21, 1
      %p207 = scmp.ne.s32.totalorder %s202, %s204
      %p208 = scmp.eq.s32.totalorder %s21, 0
      %p209 = por %p207, %p208
      %p210 = scmp.ne.s32.totalorder %s202, %s204
      %p211 = scmp.eq.s32.totalorder %s26, 1
      %p212 = por %p210, %p211
      %p213 = scmp.ne.s32.totalorder %s204, %s205
      %p214 = scmp.eq.s32.totalorder %s26, 0
      %p215 = por %p213, %p214
      %p216 = scmp.ne.s32.totalorder %s204, %s205
      %p217 = scmp.eq.s32.totalorder %s27, 1
      %p218 = por %p216, %p217
      %p220 = scmp.ne.s32.totalorder %s205, %s219
      %p221 = scmp.eq.s32.totalorder %s27, 0
      %p222 = por %p220, %p221
      %s224 = sadd.s32 %s223, 1
      %p227 = scmp.eq.s32.totalorder %s21, 1
      %p228 = scmp.ne.s32.totalorder %s223, %s225
      %p229 = scmp.eq.s32.totalorder %s21, 0
      %p230 = por %p228, %p229
      %p231 = scmp.ne.s32.totalorder %s223, %s225
      %p232 = scmp.eq.s32.totalorder %s26, 1
      %p233 = por %p231, %p232
      %p234 = scmp.ne.s32.totalorder %s225, %s226
      %p235 = scmp.eq.s32.totalorder %s26, 0
      %p236 = por %p234, %p235
      %p237 = scmp.ne.s32.totalorder %s225, %s226
      %p238 = scmp.eq.s32.totalorder %s27, 1
      %p239 = por %p237, %p238
      %p241 = scmp.ne.s32.totalorder %s226, %s240
      %p242 = scmp.eq.s32.totalorder %s27, 0
      %p243 = por %p241, %p242
      %s245 = sadd.s32 %s244, 1
      %p248 = scmp.eq.s32.totalorder %s21, 1
      %p249 = scmp.ne.s32.totalorder %s244, %s246
      %p250 = scmp.eq.s32.totalorder %s21, 0
      %p251 = por %p249, %p250
      %p252 = scmp.ne.s32.totalorder %s244, %s246
      %p253 = scmp.eq.s32.totalorder %s26, 1
      %p254 = por %p252, %p253
      %p255 = scmp.ne.s32.totalorder %s246, %s247
      %p256 = scmp.eq.s32.totalorder %s26, 0
      %p257 = por %p255, %p256
      %p258 = scmp.ne.s32.totalorder %s246, %s247
      %p259 = scmp.eq.s32.totalorder %s27, 1
      %p260 = por %p258, %p259
      %p262 = scmp.ne.s32.totalorder %s247, %s261
      %p263 = scmp.eq.s32.totalorder %s27, 0
      %p264 = por %p262, %p263
      %s266 = sadd.s32 %s265, 1
      %p269 = scmp.eq.s32.totalorder %s21, 1
      %p270 = scmp.ne.s32.totalorder %s265, %s267
      %p271 = scmp.eq.s32.totalorder %s21, 0
      %p272 = por %p270, %p271
      %p273 = scmp.ne.s32.totalorder %s265, %s267
      %p274 = scmp.eq.s32.totalorder %s26, 1
      %p275 = por %p273, %p274
      %p276 = scmp.ne.s32.totalorder %s267, %s268
      %p277 = scmp.eq.s32.totalorder %s26, 0
      %p278 = por %p276, %p277
      %p279 = scmp.ne.s32.totalorder %s267, %s268
      %p280 = scmp.eq.s32.totalorder %s27, 1
      %p281 = por %p279, %p280
      %p283 = scmp.ne.s32.totalorder %s268, %s282
      %p284 = scmp.eq.s32.totalorder %s27, 0
      %p285 = por %p283, %p284
      %s286 = ssub.s32 %s21, %s28
      %p287 = scmp.eq.s32.totalorder %s286, 0
      %s289 = sadd.s32 %s288, 1
      %s290 = scalar_select %p287, %s288, %s289
      %p293 = pneg %p287
      %p294 = scmp.eq.s32.totalorder %s21, 1
      %p295 = por %p293, %p294
      %p296 = scmp.ne.s32.totalorder %s288, %s291
      %p297 = scmp.eq.s32.totalorder %s21, 0
      %p298 = por %p296, %p297
      %p299 = scmp.ne.s32.totalorder %s288, %s291
      %p300 = scmp.eq.s32.totalorder %s26, 1
      %p301 = por %p299, %p300
      %p302 = scmp.ne.s32.totalorder %s291, %s292
      %p303 = scmp.eq.s32.totalorder %s26, 0
      %p304 = por %p302, %p303
      %p305 = scmp.ne.s32.totalorder %s291, %s292
      %p306 = scmp.eq.s32.totalorder %s27, 1
      %p307 = por %p305, %p306
      %p309 = scmp.ne.s32.totalorder %s292, %s308
      %p310 = scmp.eq.s32.totalorder %s27, 0
      %p311 = por %p309, %p310
      %p312 = scmp.le.s32.totalorder 1, %s21
      %p313 = scmp.lt.s32.totalorder %s21, 3
      %p314 = pnand %p312, %p313
      %p315 = pneg %p314
      // Predicated region
      $region9: #{tpu_custom_call.1} parent=5 // pred_check
        _
      $region10: #{tpu_custom_call.1} parent=5 // pred_check_branch
        %317 = sbr.rel (%p314) target = $region12
      $region11: #{tpu_custom_call.1} parent=5 // pred_region
        %s318 = ssub.s32 %s21, 1
        // Predicated region
        $region13: #{tpu_custom_call.1} parent=11 // pred_check
          %p319 = pneg %p68
        $region14: #{tpu_custom_call.1} parent=11 // pred_check_branch
          %321 = sbr.rel (%p319) target = $region16
        $region15: #{tpu_custom_call.1} parent=11 // pred_region
          _
        $region16: #{tpu_custom_call.1} parent=11 // pred_fallthru
          _
        // Predicated region
        $region17: #{tpu_custom_call.1} parent=11 // pred_check
          %p322 = pneg %p89
        $region18: #{tpu_custom_call.1} parent=11 // pred_check_branch
          %324 = sbr.rel (%p322) target = $region20
        $region19: #{tpu_custom_call.1} parent=11 // pred_region
          _
        $region20: #{tpu_custom_call.1} parent=11 // pred_fallthru
          _
        // Predicated region
        $region21: #{tpu_custom_call.1} parent=11 // pred_check
          %p325 = pneg %p110
        $region22: #{tpu_custom_call.1} parent=11 // pred_check_branch
          %327 = sbr.rel (%p325) target = $region24
        $region23: #{tpu_custom_call.1} parent=11 // pred_region
          _
        $region24: #{tpu_custom_call.1} parent=11 // pred_fallthru
          _
        // Predicated region
        $region25: #{tpu_custom_call.1} parent=11 // pred_check
          %p328 = pneg %p131
        $region26: #{tpu_custom_call.1} parent=11 // pred_check_branch
          %330 = sbr.rel (%p328) target = $region28
        $region27: #{tpu_custom_call.1} parent=11 // pred_region
          _
        $region28: #{tpu_custom_call.1} parent=11 // pred_fallthru
          _
        // Predicated region
        $region29: #{tpu_custom_call.1} parent=11 // pred_check
          %p331 = pneg %p152
        $region30: #{tpu_custom_call.1} parent=11 // pred_check_branch
          %333 = sbr.rel (%p331) target = $region32
        $region31: #{tpu_custom_call.1} parent=11 // pred_region
          _
        $region32: #{tpu_custom_call.1} parent=11 // pred_fallthru
          _
        // Predicated region
        $region33: #{tpu_custom_call.1} parent=11 // pred_check
          %p334 = pneg %p173
        $region34: #{tpu_custom_call.1} parent=11 // pred_check_branch
          %336 = sbr.rel (%p334) target = $region36
        $region35: #{tpu_custom_call.1} parent=11 // pred_region
          _
        $region36: #{tpu_custom_call.1} parent=11 // pred_fallthru
          _
        // Predicated region
        $region37: #{tpu_custom_call.1} parent=11 // pred_check
          %p337 = pneg %p194
        $region38: #{tpu_custom_call.1} parent=11 // pred_check_branch
          %339 = sbr.rel (%p337) target = $region40
        $region39: #{tpu_custom_call.1} parent=11 // pred_region
          _
        $region40: #{tpu_custom_call.1} parent=11 // pred_fallthru
          _
        // Predicated region
        $region41: #{tpu_custom_call.1} parent=11 // pred_check
          %p340 = pneg %p215
        $region42: #{tpu_custom_call.1} parent=11 // pred_check_branch
          %342 = sbr.rel (%p340) target = $region44
        $region43: #{tpu_custom_call.1} parent=11 // pred_region
          _
        $region44: #{tpu_custom_call.1} parent=11 // pred_fallthru
          _
        // Predicated region
        $region45: #{tpu_custom_call.1} parent=11 // pred_check
          %p343 = pneg %p236
        $region46: #{tpu_custom_call.1} parent=11 // pred_check_branch
          %345 = sbr.rel (%p343) target = $region48
        $region47: #{tpu_custom_call.1} parent=11 // pred_region
          _
        $region48: #{tpu_custom_call.1} parent=11 // pred_fallthru
          _
        // Predicated region
        $region49: #{tpu_custom_call.1} parent=11 // pred_check
          %p346 = pneg %p257
        $region50: #{tpu_custom_call.1} parent=11 // pred_check_branch
          %348 = sbr.rel (%p346) target = $region52
        $region51: #{tpu_custom_call.1} parent=11 // pred_region
          _
        $region52: #{tpu_custom_call.1} parent=11 // pred_fallthru
          _
        // Predicated region
        $region53: #{tpu_custom_call.1} parent=11 // pred_check
          %p349 = pneg %p278
        $region54: #{tpu_custom_call.1} parent=11 // pred_check_branch
          %351 = sbr.rel (%p349) target = $region56
        $region55: #{tpu_custom_call.1} parent=11 // pred_region
          _
        $region56: #{tpu_custom_call.1} parent=11 // pred_fallthru
          _
      $region12: #{tpu_custom_call.1} parent=5 // pred_fallthru
        _
      %p352 = scmp.lt.s32.totalorder %s21, 2
      // Predicated region
      $region57: #{tpu_custom_call.1} parent=5 // pred_check
        %p353 = pneg %p352
      $region58: #{tpu_custom_call.1} parent=5 // pred_check_branch
        %355 = sbr.rel (%p353) target = $region60
      $region59: #{tpu_custom_call.1} parent=5 // pred_region
        // Predicated region
        $region61: #{tpu_custom_call.1} parent=59 // pred_check
          %p356 = pneg %p41
        $region62: #{tpu_custom_call.1} parent=59 // pred_check_branch
          %358 = sbr.rel (%p356) target = $region64
        $region63: #{tpu_custom_call.1} parent=59 // pred_region
          %p359 = scmp.lt.s32.totalorder %s21, 1
          %s360 = scalar_select %p359, %s21, 1
          %s361 = smul.addr %s360, 8
          %s362 = scalar_lea.vmem %s0, %s361
        $region64: #{tpu_custom_call.1} parent=59 // pred_fallthru
          _
      $region60: #{tpu_custom_call.1} parent=5 // pred_fallthru
        _
      %p363 = scmp.le.s32.totalorder 1, %s21
      %p364 = scmp.lt.s32.totalorder %s21, 3
      %p365 = pnand %p363, %p364
      %p366 = pneg %p365
      // Predicated region
      $region65: #{tpu_custom_call.1} parent=5 // pred_check
        _
      $region66: #{tpu_custom_call.1} parent=5 // pred_check_branch
        %368 = sbr.rel (%p365) target = $region68
      $region67: #{tpu_custom_call.1} parent=5 // pred_region
        %s369 = ssub.s32 %s21, 1
        %p370 = scmp.lt.s32.totalorder %s26, 1
        %s371 = scalar_select %p370, %s26, 1
        %s372 = smul.addr %s371, 8
        %s373 = scalar_lea.vmem %s0, %s372
        %p374 = pneg %p47
        %p375 = pneg %p44
        %p376 = pneg %p68
        %p377 = pneg %p65
        %p378 = pneg %p89
        %p379 = pneg %p86
        %p380 = pneg %p110
        %p381 = pneg %p107
        %p382 = pneg %p131
        %p383 = pneg %p128
        %p384 = pneg %p152
        %p385 = pneg %p149
        %p386 = pneg %p173
        %p387 = pneg %p170
        %p388 = pneg %p194
        %p389 = pneg %p191
        %p390 = pneg %p215
        %p391 = pneg %p212
        %p392 = pneg %p236
        %p393 = pneg %p233
        %p394 = pneg %p257
        %p395 = pneg %p254
        %p396 = pneg %p278
        %p397 = pneg %p275
        %p398 = pneg %p304
        %p399 = pneg %p301
        %s400 = sand.u32 %s291, 1
        %s401 = scalar_lea.sflag [#allocation4], %s400
        %s402 = sand.u32 %s291, 1
        %s403 = smul.addr %s402, 8
        %s404 = scalar_lea.vmem [#allocation3], %s403
        %p405 = scmp.lt.s32.totalorder %s26, 1
        %s406 = scalar_select %p405, %s26, 1
        %s407 = smul.addr %s406, 8
        %s408 = scalar_lea.vmem %s0, %s407
        %v410 = vld [vmem:[%s408] sm:$0xff]
        %v411 = vld [vmem:[%s1] sm:$0x1]
        %v412 = vld [vmem:[%s2] sm:$0x1]
        %vm413 = vcmask 261120
        %v414 = vsel %vm413, %v410, 0.0
        %415 = vadd.xlane.f32.xlu0 %v414
        %v416 = vpop.xlane.xlu0 %415
        %v417 = vrcp.pop 32.0
        %v418 = vmul.f32 %v416, %v417
        %v419 = vsub.f32 %v410, %v418
        %v420 = vmul.f32 %v419, %v419
        %v421 = vsel %vm413, %v420, 0.0
        %422 = vadd.xlane.f32.xlu0 %v421
        %v423 = vpop.xlane.xlu0 %422
        %v424 = vmul.f32 %v423, %v417
        %v425 = vadd.f32 %v424, 1e-05
        %v426 = vrsqrt.pop %v425
        %v427 = vmul.f32 %v419, %v426
        %v429 = vlaneseq
        %v430 = vshrl.u32 %v429, 7
        %v431 = vsub.s32 0, %v430
        %v432 = vrot.slane %v411, %v431
        %v434 = vmul.f32 %v427, %v432
        %v436 = vlaneseq
        %v437 = vshrl.u32 %v436, 7
        %v438 = vsub.s32 0, %v437
        %v439 = vrot.slane %v412, %v438
        %v441 = vadd.f32 %v434, %v439
        %v442 = vpack.c.bf16 %v441, %v441
        %v443 = vld [vmem:[%s3] sm:$0xff]
        %v444 = vld [vmem:[%s3 + $0x8] sm:$0xf]
        %v445 = vld [vmem:[%s3 + $0xc] sm:$0xff]
        %v446 = vld [vmem:[%s3 + $0x14] sm:$0xf]
        %v447 = vld [vmem:[%s3 + $0x18] sm:$0xff]
        %v448 = vld [vmem:[%s3 + $0x20] sm:$0xf]
        %v449 = vld [vmem:[%s3 + $0x24] sm:$0xff]
        %v450 = vld [vmem:[%s3 + $0x2c] sm:$0xf]
        %v459 = vunpack.c.l.b16 %v443
        %v460 = vunpack.c.h.b16 %v443
        %v461 = vunpack.c.l.b16 %v444
        %v462 = vunpack.c.l.b16 %v445
        %v463 = vunpack.c.h.b16 %v445
        %v464 = vunpack.c.l.b16 %v446
        %v465 = vunpack.c.l.b16 %v447
        %v466 = vunpack.c.h.b16 %v447
        %v467 = vunpack.c.l.b16 %v448
        %v468 = vunpack.c.l.b16 %v449
        %v469 = vunpack.c.h.b16 %v449
        %v470 = vunpack.c.l.b16 %v450
        %v471 = vpack.c.b16 %v462, %v459
        %v472 = vpack.c.b16 %v463, %v460
        %v473 = vpack.c.b16 %v464, %v461
        %v474 = vpack.c.b16 %v468, %v465
        %v475 = vpack.c.b16 %v469, %v466
        %v476 = vpack.c.b16 %v470, %v467
        %v484 = vsel %vm413, %v442, 0
        %486 = vmatprep.subr.bf16.mxu0 %v472
        %487 = vmatpush1.bf16.msra.mxu0 %v471
        %488 = vmatprep.subr.bf16.mxu0 %v475
        %489 = vmatpush1.bf16.msra.mxu0 %v474
        %490 = vmatprep.subr.bf16.mxu0 0
        %491 = vmatpush1.bf16.msra.mxu0 0
        %492 = vmatprep.subr.bf16.mxu0 0
        %493 = vmatpush1.bf16.msra.mxu0 0
        %494 = vmatprep.subr.bf16.mxu0 0
        %495 = vmatpush1.bf16.msra.mxu0 0
        %496 = vmatprep.subr.bf16.mxu0 0
        %497 = vmatpush1.bf16.msra.mxu0 0
        %498 = vmatprep.subr.bf16.mxu0 0
        %499 = vmatpush1.bf16.msra.mxu0 0
        %500 = vmatprep.subr.bf16.mxu0 0
        %501 = vmatpush1.bf16.msra.mxu0 0
        %502 = vmatprep.subr.bf16.mxu0 0
        %503 = vmatpush1.bf16.msra.mxu0 0
        %504 = vmatprep.subr.bf16.mxu0 0
        %505 = vmatpush1.bf16.msra.mxu0 0
        %506 = vmatprep.subr.bf16.mxu0 0
        %507 = vmatpush1.bf16.msra.mxu0 0
        %508 = vmatprep.subr.bf16.mxu0 0
        %509 = vmatpush1.bf16.msra.mxu0 0
        %510 = vmatprep.subr.bf16.mxu0 0
        %511 = vmatpush1.bf16.msra.mxu0 0
        %512 = vmatprep.subr.bf16.mxu0 0
        %513 = vmatpush1.bf16.msra.mxu0 0
        %514 = vmatprep.subr.bf16.mxu0 0
        %515 = vmatpush1.bf16.msra.mxu0 0
        %516 = vmatprep.subr.bf16.mxu0 0
        %517 = vmatpush1.bf16.msra.mxu0 0
        %518 = vmatprep.mubr.bf16.mxu0 0
        %519 = vmatmul.mubr.bf16.gmra.mrb[0].mxu0 %v484
        %v520 = vpop.f32.mrb[0].mxu0
        %v521 = vadd.f32 0.0, %v520
        %v522 = vpop.f32.mrb[0].mxu0
        %v523 = vadd.f32 0.0, %v522
        %v524 = vpop.f32.mrb[0].mxu0
        %v525 = vpop.f32.mrb[0].mxu0
        %526 = vdwg.mxu0
        %527 = vmatprep.subr.bf16.mxu0 0
        %528 = vmatpush1.bf16.msra.mxu0 %v473
        %529 = vmatprep.subr.bf16.mxu0 0
        %530 = vmatpush1.bf16.msra.mxu0 %v476
        %531 = vmatprep.subr.bf16.mxu0 0
        %532 = vmatpush1.bf16.msra.mxu0 0
        %533 = vmatprep.subr.bf16.mxu0 0
        %534 = vmatpush1.bf16.msra.mxu0 0
        %535 = vmatprep.subr.bf16.mxu0 0
        %536 = vmatpush1.bf16.msra.mxu0 0
        %537 = vmatprep.subr.bf16.mxu0 0
        %538 = vmatpush1.bf16.msra.mxu0 0
        %539 = vmatprep.subr.bf16.mxu0 0
        %540 = vmatpush1.bf16.msra.mxu0 0
        %541 = vmatprep.subr.bf16.mxu0 0
        %542 = vmatpush1.bf16.msra.mxu0 0
        %543 = vmatprep.subr.bf16.mxu0 0
        %544 = vmatpush1.bf16.msra.mxu0 0
        %545 = vmatprep.subr.bf16.mxu0 0
        %546 = vmatpush1.bf16.msra.mxu0 0
        %547 = vmatprep.subr.bf16.mxu0 0
        %548 = vmatpush1.bf16.msra.mxu0 0
        %549 = vmatprep.subr.bf16.mxu0 0
        %550 = vmatpush1.bf16.msra.mxu0 0
        %551 = vmatprep.subr.bf16.mxu0 0
        %552 = vmatpush1.bf16.msra.mxu0 0
        %553 = vmatprep.subr.bf16.mxu0 0
        %554 = vmatpush1.bf16.msra.mxu0 0
        %555 = vmatprep.subr.bf16.mxu0 0
        %556 = vmatpush1.bf16.msra.mxu0 0
        %557 = vmatprep.subr.bf16.mxu0 0
        %558 = vmatpush1.bf16.msra.mxu0 0
        %559 = vmatprep.mubr.bf16.mxu0 0
        %560 = vmatmul.mubr.bf16.gmra.mrb[0].mxu0 %v484
        %v561 = vpop.f32.mrb[0].mxu0
        %v562 = vadd.f32 0.0, %v561
        %v563 = vpop.f32.mrb[0].mxu0
        %v564 = vpop.f32.mrb[0].mxu0
        %v565 = vpop.f32.mrb[0].mxu0
        %566 = vdwg.mxu0
        %v567 = vmul.f32 %v521, 0.125
        %v568 = vpack.c.bf16 %v567, %v567
        %v569 = vpack.c.bf16 %v523, %v523
        %v570 = vpack.c.bf16 %v562, %v562
        %vm571 = vcmask 523264
        %v573 = vsel %vm571, %v568, 0
        %v576 = vsel %vm571, %v569, 0
        %578 = vmatprep.subr.bf16.mxu0 0
        %579 = vmatpush1.bf16.xpose.msra.mxu0 %v576
        %580 = vmatprep.subr.bf16.mxu0 0
        %581 = vmatpush1.bf16.xpose.msra.mxu0 0
        %582 = vmatprep.subr.bf16.mxu0 0
        %583 = vmatpush1.bf16.xpose.msra.mxu0 0
        %584 = vmatprep.subr.bf16.mxu0 0
        %585 = vmatpush1.bf16.xpose.msra.mxu0 0
        %586 = vmatprep.subr.bf16.mxu0 0
        %587 = vmatpush1.bf16.xpose.msra.mxu0 0
        %588 = vmatprep.subr.bf16.mxu0 0
        %589 = vmatpush1.bf16.xpose.msra.mxu0 0
        %590 = vmatprep.subr.bf16.mxu0 0
        %591 = vmatpush1.bf16.xpose.msra.mxu0 0
        %592 = vmatprep.subr.bf16.mxu0 0
        %593 = vmatpush1.bf16.xpose.msra.mxu0 0
        %594 = vmatprep.subr.bf16.mxu0 0
        %595 = vmatpush1.bf16.xpose.msra.mxu0 0
        %596 = vmatprep.subr.bf16.mxu0 0
        %597 = vmatpush1.bf16.xpose.msra.mxu0 0
        %598 = vmatprep.subr.bf16.mxu0 0
        %599 = vmatpush1.bf16.xpose.msra.mxu0 0
        %600 = vmatprep.subr.bf16.mxu0 0
        %601 = vmatpush1.bf16.xpose.msra.mxu0 0
        %602 = vmatprep.subr.bf16.mxu0 0
        %603 = vmatpush1.bf16.xpose.msra.mxu0 0
        %604 = vmatprep.subr.bf16.mxu0 0
        %605 = vmatpush1.bf16.xpose.msra.mxu0 0
        %606 = vmatprep.subr.bf16.mxu0 0
        %607 = vmatpush1.bf16.xpose.msra.mxu0 0
        %608 = vmatprep.subr.bf16.mxu0 0
        %609 = vmatpush1.bf16.xpose.msra.mxu0 0
        %610 = vmatprep.mubr.bf16.mxu0 0
        %611 = vmatmul.mubr.bf16.gmra.mrb[0].mxu0 %v573
        %v612 = vpop.f32.mrb[0].mxu0
        %v613 = vadd.f32 0.0, %v612
        %v614 = vpop.f32.mrb[0].mxu0
        %v615 = vpop.f32.mrb[0].mxu0
        %v616 = vpop.f32.mrb[0].mxu0
        %617 = vdwg.mxu0
        %vm618 = vcmask 64512
        %v619 = vsel %vm618, %v613, -inf
        %620 = vmax.xlane.f32.xlu0 %v619
        %v621 = vpop.xlane.xlu0 %620
        %v622 = vsub.f32 %v613, %v621
        %v623 = vmul.f32 %v622, 1.442695
        %v624 = vpow.pop %v623
        %v625 = vsel %vm618, %v624, 0.0
        %626 = vadd.xlane.f32.xlu0 %v625
        %v627 = vpop.xlane.xlu0 %626
        %v628 = vrcp.pop %v627
        %v629 = vmul.f32 %v624, %v628
        %v630 = vpack.c.bf16 %v629, %v629
        %v632 = vsel %vm618, %v630, 0
        %vm634 = vcmask 1043456
        %v636 = vsel %vm634, %v570, 0
        %638 = vmatprep.subr.bf16.mxu0 0
        %639 = vmatpush1.bf16.msra.mxu0 %v636
        %640 = vmatprep.subr.bf16.mxu0 0
        %641 = vmatpush1.bf16.msra.mxu0 0
        %642 = vmatprep.subr.bf16.mxu0 0
        %643 = vmatpush1.bf16.msra.mxu0 0
        %644 = vmatprep.subr.bf16.mxu0 0
        %645 = vmatpush1.bf16.msra.mxu0 0
        %646 = vmatprep.subr.bf16.mxu0 0
        %647 = vmatpush1.bf16.msra.mxu0 0
        %648 = vmatprep.subr.bf16.mxu0 0
        %649 = vmatpush1.bf16.msra.mxu0 0
        %650 = vmatprep.subr.bf16.mxu0 0
        %651 = vmatpush1.bf16.msra.mxu0 0
        %652 = vmatprep.subr.bf16.mxu0 0
        %653 = vmatpush1.bf16.msra.mxu0 0
        %654 = vmatprep.subr.bf16.mxu0 0
        %655 = vmatpush1.bf16.msra.mxu0 0
        %656 = vmatprep.subr.bf16.mxu0 0
        %657 = vmatpush1.bf16.msra.mxu0 0
        %658 = vmatprep.subr.bf16.mxu0 0
        %659 = vmatpush1.bf16.msra.mxu0 0
        %660 = vmatprep.subr.bf16.mxu0 0
        %661 = vmatpush1.bf16.msra.mxu0 0
        %662 = vmatprep.subr.bf16.mxu0 0
        %663 = vmatpush1.bf16.msra.mxu0 0
        %664 = vmatprep.subr.bf16.mxu0 0
        %665 = vmatpush1.bf16.msra.mxu0 0
        %666 = vmatprep.subr.bf16.mxu0 0
        %667 = vmatpush1.bf16.msra.mxu0 0
        %668 = vmatprep.subr.bf16.mxu0 0
        %669 = vmatpush1.bf16.msra.mxu0 0
        %670 = vmatprep.mubr.bf16.mxu0 0
        %671 = vmatmul.mubr.bf16.gmra.mrb[0].mxu0 %v632
        %v672 = vpop.f32.mrb[0].mxu0
        %v673 = vadd.f32 0.0, %v672
        %v674 = vpop.f32.mrb[0].mxu0
        %v675 = vpop.f32.mrb[0].mxu0
        %v676 = vpop.f32.mrb[0].mxu0
        %677 = vdwg.mxu0
        %v678 = vpack.c.bf16 %v673, %v673
        %vm679 = vcmask 519168
        %680 = vst.msk [vmem:[#allocation2] sm:$0xf] %vm679, %v678
        %682 = vrot.lane.b32.xlu0 %v568, 64
        %v683 = vpop.permute.xlu0 %682
        %685 = vrot.lane.b32.xlu0 %v569, 64
        %v686 = vpop.permute.xlu0 %685
        %v688 = vsel %vm571, %v683, 0
        %v691 = vsel %vm571, %v686, 0
        %693 = vmatprep.subr.bf16.mxu0 0
        %694 = vmatpush1.bf16.xpose.msra.mxu0 %v691
        %695 = vmatprep.subr.bf16.mxu0 0
        %696 = vmatpush1.bf16.xpose.msra.mxu0 0
        %697 = vmatprep.subr.bf16.mxu0 0
        %698 = vmatpush1.bf16.xpose.msra.mxu0 0
        %699 = vmatprep.subr.bf16.mxu0 0
        %700 = vmatpush1.bf16.xpose.msra.mxu0 0
        %701 = vmatprep.subr.bf16.mxu0 0
        %702 = vmatpush1.bf16.xpose.msra.mxu0 0
        %703 = vmatprep.subr.bf16.mxu0 0
        %704 = vmatpush1.bf16.xpose.msra.mxu0 0
        %705 = vmatprep.subr.bf16.mxu0 0
        %706 = vmatpush1.bf16.xpose.msra.mxu0 0
        %707 = vmatprep.subr.bf16.mxu0 0
        %708 = vmatpush1.bf16.xpose.msra.mxu0 0
        %709 = vmatprep.subr.bf16.mxu0 0
        %710 = vmatpush1.bf16.xpose.msra.mxu0 0
        %711 = vmatprep.subr.bf16.mxu0 0
        %712 = vmatpush1.bf16.xpose.msra.mxu0 0
        %713 = vmatprep.subr.bf16.mxu0 0
        %714 = vmatpush1.bf16.xpose.msra.mxu0 0
        %715 = vmatprep.subr.bf16.mxu0 0
        %716 = vmatpush1.bf16.xpose.msra.mxu0 0
        %717 = vmatprep.subr.bf16.mxu0 0
        %718 = vmatpush1.bf16.xpose.msra.mxu0 0
        %719 = vmatprep.subr.bf16.mxu0 0
        %720 = vmatpush1.bf16.xpose.msra.mxu0 0
        %721 = vmatprep.subr.bf16.mxu0 0
        %722 = vmatpush1.bf16.xpose.msra.mxu0 0
        %723 = vmatprep.subr.bf16.mxu0 0
        %724 = vmatpush1.bf16.xpose.msra.mxu0 0
        %725 = vmatprep.mubr.bf16.mxu0 0
        %726 = vmatmul.mubr.bf16.gmra.mrb[0].mxu0 %v688
        %v727 = vpop.f32.mrb[0].mxu0
        %v728 = vadd.f32 0.0, %v727
        %v729 = vpop.f32.mrb[0].mxu0
        %v730 = vpop.f32.mrb[0].mxu0
        %v731 = vpop.f32.mrb[0].mxu0
        %732 = vdwg.mxu0
        %v733 = vsel %vm618, %v728, -inf
        %734 = vmax.xlane.f32.xlu0 %v733
        %v735 = vpop.xlane.xlu0 %734
        %v736 = vsub.f32 %v728, %v735
        %v737 = vmul.f32 %v736, 1.442695
        %v738 = vpow.pop %v737
        %v739 = vsel %vm618, %v738, 0.0
        %740 = vadd.xlane.f32.xlu0 %v739
        %v741 = vpop.xlane.xlu0 %740
        %v742 = vrcp.pop %v741
        %v743 = vmul.f32 %v738, %v742
        %v744 = vpack.c.bf16 %v743, %v743
        %746 = vrot.lane.b32.xlu0 %v570, 64
        %v747 = vpop.permute.xlu0 %746
        %v749 = vsel %vm618, %v744, 0
        %v752 = vsel %vm634, %v747, 0
        %754 = vmatprep.subr.bf16.mxu0 0
        %755 = vmatpush1.bf16.msra.mxu0 %v752
        %756 = vmatprep.subr.bf16.mxu0 0
        %757 = vmatpush1.bf16.msra.mxu0 0
        %758 = vmatprep.subr.bf16.mxu0 0
        %759 = vmatpush1.bf16.msra.mxu0 0
        %760 = vmatprep.subr.bf16.mxu0 0
        %761 = vmatpush1.bf16.msra.mxu0 0
        %762 = vmatprep.subr.bf16.mxu0 0
        %763 = vmatpush1.bf16.msra.mxu0 0
        %764 = vmatprep.subr.bf16.mxu0 0
        %765 = vmatpush1.bf16.msra.mxu0 0
        %766 = vmatprep.subr.bf16.mxu0 0
        %767 = vmatpush1.bf16.msra.mxu0 0
        %768 = vmatprep.subr.bf16.mxu0 0
        %769 = vmatpush1.bf16.msra.mxu0 0
        %770 = vmatprep.subr.bf16.mxu0 0
        %771 = vmatpush1.bf16.msra.mxu0 0
        %772 = vmatprep.subr.bf16.mxu0 0
        %773 = vmatpush1.bf16.msra.mxu0 0
        %774 = vmatprep.subr.bf16.mxu0 0
        %775 = vmatpush1.bf16.msra.mxu0 0
        %776 = vmatprep.subr.bf16.mxu0 0
        %777 = vmatpush1.bf16.msra.mxu0 0
        %778 = vmatprep.subr.bf16.mxu0 0
        %779 = vmatpush1.bf16.msra.mxu0 0
        %780 = vmatprep.subr.bf16.mxu0 0
        %781 = vmatpush1.bf16.msra.mxu0 0
        %782 = vmatprep.subr.bf16.mxu0 0
        %783 = vmatpush1.bf16.msra.mxu0 0
        %784 = vmatprep.subr.bf16.mxu0 0
        %785 = vmatpush1.bf16.msra.mxu0 0
        %786 = vmatprep.mubr.bf16.mxu0 0
        %787 = vmatmul.mubr.bf16.gmra.mrb[0].mxu0 %v749
        %v788 = vpop.f32.mrb[0].mxu0
        %v789 = vadd.f32 0.0, %v788
        %v790 = vpop.f32.mrb[0].mxu0
        %v791 = vpop.f32.mrb[0].mxu0
        %v792 = vpop.f32.mrb[0].mxu0
        %793 = vdwg.mxu0
        %v794 = vpack.c.bf16 %v789, %v789
        %v796 = vunpack.c.l.b16 %v794
        %v797 = vpack.c.b16 %v796, %v796
        %798 = vrot.lane.b32.xlu0 %v797, 64
        %v799 = vpop.permute.xlu0 %798
        %vm801 = vcmask 1043968
        %802 = vst.msk [vmem:[#allocation2] sm:$0xf] %vm801, %v799
        %v803 = vld [vmem:[#allocation2] sm:$0xf]
        %v804 = vld [vmem:[%s4] sm:$0xf]
        %v805 = vld [vmem:[%s4 + $0x4] sm:$0xf]
        %v806 = vld [vmem:[%s4 + $0x8] sm:$0xf]
        %v807 = vld [vmem:[%s4 + $0xc] sm:$0xf]
        %v808 = vld [vmem:[%s4 + $0x10] sm:$0xf]
        %v809 = vld [vmem:[%s4 + $0x14] sm:$0xf]
        %v810 = vld [vmem:[%s4 + $0x18] sm:$0xf]
        %v811 = vld [vmem:[%s4 + $0x1c] sm:$0xf]
        %v812 = vld [vmem:[%s4 + $0x20] sm:$0xf]
        %v813 = vld [vmem:[%s4 + $0x24] sm:$0xf]
        %v814 = vld [vmem:[%s4 + $0x28] sm:$0xf]
        %v815 = vld [vmem:[%s4 + $0x2c] sm:$0xf]
        %v816 = vld [vmem:[%s4 + $0x30] sm:$0xf]
        %v817 = vld [vmem:[%s4 + $0x34] sm:$0xf]
        %v818 = vld [vmem:[%s4 + $0x38] sm:$0xf]
        %v819 = vld [vmem:[%s4 + $0x3c] sm:$0xf]
        %v820 = vld [vmem:[%s5] sm:$0x1]
        %v822 = vlaneseq
        %v823 = vshrl.u32 %v822, 7
        %v824 = vsub.s32 0, %v823
        %v825 = vrot.slane %v820, %v824
        %v843 = vunpack.c.l.b16 %v804
        %v844 = vunpack.c.l.b16 %v805
        %v845 = vunpack.c.l.b16 %v806
        %v846 = vunpack.c.l.b16 %v807
        %v847 = vunpack.c.l.b16 %v808
        %v848 = vunpack.c.l.b16 %v809
        %v849 = vunpack.c.l.b16 %v810
        %v850 = vunpack.c.l.b16 %v811
        %v851 = vunpack.c.l.b16 %v812
        %v852 = vunpack.c.l.b16 %v813
        %v853 = vunpack.c.l.b16 %v814
        %v854 = vunpack.c.l.b16 %v815
        %v855 = vunpack.c.l.b16 %v816
        %v856 = vunpack.c.l.b16 %v817
        %v857 = vunpack.c.l.b16 %v818
        %v858 = vunpack.c.l.b16 %v819
        %v859 = vpack.c.b16 %v844, %v843
        %v860 = vpack.c.b16 %v846, %v845
        %v861 = vpack.c.b16 %v848, %v847
        %v862 = vpack.c.b16 %v850, %v849
        %v863 = vpack.c.b16 %v852, %v851
        %v864 = vpack.c.b16 %v854, %v853
        %v865 = vpack.c.b16 %v856, %v855
        %v866 = vpack.c.b16 %v858, %v857
        %875 = vmatprep.subr.bf16.mxu0 0
        %876 = vmatpush1.bf16.msra.mxu0 %v859
        %877 = vmatprep.subr.bf16.mxu0 0
        %878 = vmatpush1.bf16.msra.mxu0 %v860
        %879 = vmatprep.subr.bf16.mxu0 0
        %880 = vmatpush1.bf16.msra.mxu0 %v861
        %881 = vmatprep.subr.bf16.mxu0 0
        %882 = vmatpush1.bf16.msra.mxu0 %v862
        %883 = vmatprep.subr.bf16.mxu0 0
        %884 = vmatpush1.bf16.msra.mxu0 %v863
        %885 = vmatprep.subr.bf16.mxu0 0
        %886 = vmatpush1.bf16.msra.mxu0 %v864
        %887 = vmatprep.subr.bf16.mxu0 0
        %888 = vmatpush1.bf16.msra.mxu0 %v865
        %889 = vmatprep.subr.bf16.mxu0 0
        %890 = vmatpush1.bf16.msra.mxu0 %v866
        %891 = vmatprep.subr.bf16.mxu0 0
        %892 = vmatpush1.bf16.msra.mxu0 0
        %893 = vmatprep.subr.bf16.mxu0 0
        %894 = vmatpush1.bf16.msra.mxu0 0
        %895 = vmatprep.subr.bf16.mxu0 0
        %896 = vmatpush1.bf16.msra.mxu0 0
        %897 = vmatprep.subr.bf16.mxu0 0
        %898 = vmatpush1.bf16.msra.mxu0 0
        %899 = vmatprep.subr.bf16.mxu0 0
        %900 = vmatpush1.bf16.msra.mxu0 0
        %901 = vmatprep.subr.bf16.mxu0 0
        %902 = vmatpush1.bf16.msra.mxu0 0
        %903 = vmatprep.subr.bf16.mxu0 0
        %904 = vmatpush1.bf16.msra.mxu0 0
        %905 = vmatprep.subr.bf16.mxu0 0
        %906 = vmatpush1.bf16.msra.mxu0 0
        %907 = vmatprep.mubr.bf16.mxu0 0
        %908 = vmatmul.mubr.bf16.gmra.mrb[0].mxu0 %v803
        %v909 = vpop.f32.mrb[0].mxu0
        %v910 = vadd.f32 %v825, %v909
        %v911 = vpop.f32.mrb[0].mxu0
        %v912 = vpop.f32.mrb[0].mxu0
        %v913 = vpop.f32.mrb[0].mxu0
        %914 = vdwg.mxu0
        %v915 = vadd.f32 %v910, %v410
        %v916 = vld [vmem:[%s6] sm:$0x1]
        %v917 = vld [vmem:[%s7] sm:$0x1]
        %v918 = vsel %vm413, %v915, 0.0
        %919 = vadd.xlane.f32.xlu0 %v918
        %v920 = vpop.xlane.xlu0 %919
        %v921 = vmul.f32 %v920, %v417
        %v922 = vsub.f32 %v915, %v921
        %v923 = vmul.f32 %v922, %v922
        %v924 = vsel %vm413, %v923, 0.0
        %925 = vadd.xlane.f32.xlu0 %v924
        %v926 = vpop.xlane.xlu0 %925
        %v927 = vmul.f32 %v926, %v417
        %v928 = vadd.f32 %v927, 1e-05
        %v929 = vrsqrt.pop %v928
        %v930 = vmul.f32 %v922, %v929
        %v932 = vlaneseq
        %v933 = vshrl.u32 %v932, 7
        %v934 = vsub.s32 0, %v933
        %v935 = vrot.slane %v916, %v934
        %v937 = vmul.f32 %v930, %v935
        %v939 = vlaneseq
        %v940 = vshrl.u32 %v939, 7
        %v941 = vsub.s32 0, %v940
        %v942 = vrot.slane %v917, %v941
        %v944 = vadd.f32 %v937, %v942
        %v945 = vpack.c.bf16 %v944, %v944
        %v946 = vld [vmem:[%s8] sm:$0xf]
        %v947 = vld [vmem:[%s8 + $0x4] sm:$0xf]
        %v948 = vld [vmem:[%s8 + $0x8] sm:$0xf]
        %v949 = vld [vmem:[%s8 + $0xc] sm:$0xf]
        %v950 = vld [vmem:[%s9] sm:$0x1]
        %v952 = vlaneseq
        %v953 = vshrl.u32 %v952, 7
        %v954 = vsub.s32 0, %v953
        %v955 = vrot.slane %v950, %v954
        %v961 = vunpack.c.l.b16 %v946
        %v962 = vunpack.c.l.b16 %v947
        %v963 = vunpack.c.l.b16 %v948
        %v964 = vunpack.c.l.b16 %v949
        %v965 = vpack.c.b16 %v962, %v961
        %v966 = vpack.c.b16 %v964, %v963
        %v970 = vsel %vm413, %v945, 0
        %972 = vmatprep.subr.bf16.mxu0 0
        %973 = vmatpush1.bf16.msra.mxu0 %v965
        %974 = vmatprep.subr.bf16.mxu0 0
        %975 = vmatpush1.bf16.msra.mxu0 %v966
        %976 = vmatprep.subr.bf16.mxu0 0
        %977 = vmatpush1.bf16.msra.mxu0 0
        %978 = vmatprep.subr.bf16.mxu0 0
        %979 = vmatpush1.bf16.msra.mxu0 0
        %980 = vmatprep.subr.bf16.mxu0 0
        %981 = vmatpush1.bf16.msra.mxu0 0
        %982 = vmatprep.subr.bf16.mxu0 0
        %983 = vmatpush1.bf16.msra.mxu0 0
        %984 = vmatprep.subr.bf16.mxu0 0
        %985 = vmatpush1.bf16.msra.mxu0 0
        %986 = vmatprep.subr.bf16.mxu0 0
        %987 = vmatpush1.bf16.msra.mxu0 0
        %988 = vmatprep.subr.bf16.mxu0 0
        %989 = vmatpush1.bf16.msra.mxu0 0
        %990 = vmatprep.subr.bf16.mxu0 0
        %991 = vmatpush1.bf16.msra.mxu0 0
        %992 = vmatprep.subr.bf16.mxu0 0
        %993 = vmatpush1.bf16.msra.mxu0 0
        %994 = vmatprep.subr.bf16.mxu0 0
        %995 = vmatpush1.bf16.msra.mxu0 0
        %996 = vmatprep.subr.bf16.mxu0 0
        %997 = vmatpush1.bf16.msra.mxu0 0
        %998 = vmatprep.subr.bf16.mxu0 0
        %999 = vmatpush1.bf16.msra.mxu0 0
        %1000 = vmatprep.subr.bf16.mxu0 0
        %1001 = vmatpush1.bf16.msra.mxu0 0
        %1002 = vmatprep.subr.bf16.mxu0 0
        %1003 = vmatpush1.bf16.msra.mxu0 0
        %1004 = vmatprep.mubr.bf16.mxu0 0
        %1005 = vmatmul.mubr.bf16.gmra.mrb[0].mxu0 %v970
        %v1006 = vpop.f32.mrb[0].mxu0
        %v1007 = vadd.f32 %v955, %v1006
        %v1008 = vpop.f32.mrb[0].mxu0
        %v1009 = vpop.f32.mrb[0].mxu0
        %v1010 = vpop.f32.mrb[0].mxu0
        %1011 = vdwg.mxu0
        %v1012 = vmul.f32 %v1007, 0.5
        %v1013 = vmul.f32 %v1007, 0.70710677
        %v1014 = verf.f32.pop %v1013
        %v1015 = vadd.f32 %v1014, 1.0
        %v1016 = vmul.f32 %v1012, %v1015
        %v1017 = vpack.c.bf16 %v1016, %v1016
        %v1018 = vld [vmem:[%s10] sm:$0xf]
        %v1019 = vld [vmem:[%s10 + $0x4] sm:$0xf]
        %v1020 = vld [vmem:[%s10 + $0x8] sm:$0xf]
        %v1021 = vld [vmem:[%s10 + $0xc] sm:$0xf]
        %v1022 = vld [vmem:[%s10 + $0x10] sm:$0xf]
        %v1023 = vld [vmem:[%s10 + $0x14] sm:$0xf]
        %v1024 = vld [vmem:[%s10 + $0x18] sm:$0xf]
        %v1025 = vld [vmem:[%s10 + $0x1c] sm:$0xf]
        %v1026 = vld [vmem:[%s10 + $0x20] sm:$0xf]
        %v1027 = vld [vmem:[%s10 + $0x24] sm:$0xf]
        %v1028 = vld [vmem:[%s10 + $0x28] sm:$0xf]
        %v1029 = vld [vmem:[%s10 + $0x2c] sm:$0xf]
        %v1030 = vld [vmem:[%s10 + $0x30] sm:$0xf]
        %v1031 = vld [vmem:[%s10 + $0x34] sm:$0xf]
        %v1032 = vld [vmem:[%s10 + $0x38] sm:$0xf]
        %v1033 = vld [vmem:[%s10 + $0x3c] sm:$0xf]
        %v1034 = vld [vmem:[%s11] sm:$0x1]
        %v1036 = vlaneseq
        %v1037 = vshrl.u32 %v1036, 7
        %v1038 = vsub.s32 0, %v1037
        %v1039 = vrot.slane %v1034, %v1038
        %v1057 = vunpack.c.l.b16 %v1018
        %v1058 = vunpack.c.l.b16 %v1019
        %v1059 = vunpack.c.l.b16 %v1020
        %v1060 = vunpack.c.l.b16 %v1021
        %v1061 = vunpack.c.l.b16 %v1022
        %v1062 = vunpack.c.l.b16 %v1023
        %v1063 = vunpack.c.l.b16 %v1024
        %v1064 = vunpack.c.l.b16 %v1025
        %v1065 = vunpack.c.l.b16 %v1026
        %v1066 = vunpack.c.l.b16 %v1027
        %v1067 = vunpack.c.l.b16 %v1028
        %v1068 = vunpack.c.l.b16 %v1029
        %v1069 = vunpack.c.l.b16 %v1030
        %v1070 = vunpack.c.l.b16 %v1031
        %v1071 = vunpack.c.l.b16 %v1032
        %v1072 = vunpack.c.l.b16 %v1033
        %v1073 = vpack.c.b16 %v1058, %v1057
        %v1074 = vpack.c.b16 %v1060, %v1059
        %v1075 = vpack.c.b16 %v1062, %v1061
        %v1076 = vpack.c.b16 %v1064, %v1063
        %v1077 = vpack.c.b16 %v1066, %v1065
        %v1078 = vpack.c.b16 %v1068, %v1067
        %v1079 = vpack.c.b16 %v1070, %v1069
        %v1080 = vpack.c.b16 %v1072, %v1071
        %1089 = vmatprep.subr.bf16.mxu0 0
        %1090 = vmatpush1.bf16.msra.mxu0 %v1073
        %1091 = vmatprep.subr.bf16.mxu0 0
        %1092 = vmatpush1.bf16.msra.mxu0 %v1074
        %1093 = vmatprep.subr.bf16.mxu0 0
        %1094 = vmatpush1.bf16.msra.mxu0 %v1075
        %1095 = vmatprep.subr.bf16.mxu0 0
        %1096 = vmatpush1.bf16.msra.mxu0 %v1076
        %1097 = vmatprep.subr.bf16.mxu0 0
        %1098 = vmatpush1.bf16.msra.mxu0 %v1077
        %1099 = vmatprep.subr.bf16.mxu0 0
        %1100 = vmatpush1.bf16.msra.mxu0 %v1078
        %1101 = vmatprep.subr.bf16.mxu0 0
        %1102 = vmatpush1.bf16.msra.mxu0 %v1079
        %1103 = vmatprep.subr.bf16.mxu0 0
        %1104 = vmatpush1.bf16.msra.mxu0 %v1080
        %1105 = vmatprep.subr.bf16.mxu0 0
        %1106 = vmatpush1.bf16.msra.mxu0 0
        %1107 = vmatprep.subr.bf16.mxu0 0
        %1108 = vmatpush1.bf16.msra.mxu0 0
        %1109 = vmatprep.subr.bf16.mxu0 0
        %1110 = vmatpush1.bf16.msra.mxu0 0
        %1111 = vmatprep.subr.bf16.mxu0 0
        %1112 = vmatpush1.bf16.msra.mxu0 0
        %1113 = vmatprep.subr.bf16.mxu0 0
        %1114 = vmatpush1.bf16.msra.mxu0 0
        %1115 = vmatprep.subr.bf16.mxu0 0
        %1116 = vmatpush1.bf16.msra.mxu0 0
        %1117 = vmatprep.subr.bf16.mxu0 0
        %1118 = vmatpush1.bf16.msra.mxu0 0
        %1119 = vmatprep.subr.bf16.mxu0 0
        %1120 = vmatpush1.bf16.msra.mxu0 0
        %1121 = vmatprep.mubr.bf16.mxu0 0
        %1122 = vmatmul.mubr.bf16.gmra.mrb[0].mxu0 %v1017
        %v1123 = vpop.f32.mrb[0].mxu0
        %v1124 = vadd.f32 %v1039, %v1123
        %v1125 = vpop.f32.mrb[0].mxu0
        %v1126 = vpop.f32.mrb[0].mxu0
        %v1127 = vpop.f32.mrb[0].mxu0
        %1128 = vdwg.mxu0
        %v1129 = vadd.f32 %v1124, %v915
        %1130 = vst.msk [vmem:[%s404] sm:$0xff] %vm413, %v1129
        %s1131 = sand.u32 %s291, 1
        %s1132 = scalar_lea.sflag [#allocation4], %s1131
        %s1133 = sand.u32 %s291, 1
        %s1134 = smul.addr %s1133, 8
        %s1135 = scalar_lea.vmem [#allocation3], %s1134
        // Predicated region
        $region69: #{tpu_custom_call.1} parent=67 // pred_check
          %p1136 = pneg %p301
        $region70: #{tpu_custom_call.1} parent=67 // pred_check_branch
          %1138 = sbr.rel (%p1136) target = $region72
        $region71: #{tpu_custom_call.1} parent=67 // pred_region
          %s1140 = ssub.s32 128, 128
          %1141 = vsyncadd %s1132, %s1140
          %s1142 = smul.addr %s26, 128
          %s1143 = scalar_lea.hbm %s12, %s1142
          %s1145 = sshll.u32 %s1135, 4
          %s1146 = int_to_ptr.vmem [resolvable:$true] %s1145
          %1148 = dma.vmem_to_hbm [thread:$0]  %s1146, 128, %s1143, %s1132
        $region72: #{tpu_custom_call.1} parent=67 // pred_fallthru
          _
      $region68: #{tpu_custom_call.1} parent=5 // pred_fallthru
        _
      %p1149 = scmp.le.s32.totalorder 2, %s21
      // Predicated region
      $region73: #{tpu_custom_call.1} parent=5 // pred_check
        %p1150 = pneg %p1149
      $region74: #{tpu_custom_call.1} parent=5 // pred_check_branch
        %1152 = sbr.rel (%p1150) target = $region76
      $region75: #{tpu_custom_call.1} parent=5 // pred_region
        %s1153 = ssub.s32 %s21, 2
        // Predicated region
        $region77: #{tpu_custom_call.1} parent=75 // pred_check
          %p1154 = pneg %p307
        $region78: #{tpu_custom_call.1} parent=75 // pred_check_branch
          %1156 = sbr.rel (%p1154) target = $region80
        $region79: #{tpu_custom_call.1} parent=75 // pred_region
          %s1157 = sand.u32 %s292, 1
          %s1158 = scalar_lea.sflag [#allocation4], %s1157
          %s1159 = sand.u32 %s292, 1
          %s1160 = smul.addr %s1159, 8
          %s1161 = scalar_lea.vmem [#allocation3], %s1160
          %1162 = dma.done %s1158, 128
        $region80: #{tpu_custom_call.1} parent=75 // pred_fallthru
          _
      $region76: #{tpu_custom_call.1} parent=5 // pred_fallthru
        _
    $region6: #{tpu_custom_call.1} parent=1 // loop_footer
      %s25 = sadd.s32 1, %s21
    $region7: #{tpu_custom_call.1} parent=1 // loop_footer_branch
      %20 = sbr.rel target = $region3
    $region8: #{tpu_custom_call.1} parent=1 // loop_exit
      _
    %1163 = vsyncpa [#allocation4], 1
    %s1164 = scalar_lea.sflag [#allocation4], 1
    %1165 = vsyncpa %s1164, 1

</llo_original>
